<compile_context>
chip_gen: v7x
topology: tpu7x:2x2x1
jax: 0.10.0
libtpu: 0.0.40
codegen_flags: <defaults>
</compile_context>

<pallas_src>
import functools

import jax
import jax.numpy as jnp
from jax.experimental import pallas as pl
from jax.experimental.pallas import tpu as pltpu

NEG_SLOPE = 0.01   # torch.nn.functional.leaky_relu default
LANE = 128         # feature dims padded to a multiple of this (lane width)
SUBLANE = 8        # f32 sublane granule: batch tiles are multiples of this


def _round_up(v, m):
    return ((v + m - 1) // m) * m


def _mlp_kernel(*refs, num_layers):
    """refs = (x_ref, wT_0_ref, ..., wT_{L-1}_ref, out_ref).

    Fully fused MLP for one batch tile: all matmuls (MXU) + leaky_relu (VPU) in
    a single pass; weights are whole-array VMEM-resident blocks.
    """
    x_ref = refs[0]
    w_refs = refs[1:1 + num_layers]
    out_ref = refs[1 + num_layers]

    h = x_ref[...]                                       # (TM, in_pad), f32 or bf16
    for i in range(num_layers - 1):
        w = w_refs[i][...]
        # MXU inputs in the weight dtype (bf16 fast path); f32 accumulation.
        h_in = h.astype(w.dtype) if h.dtype != w.dtype else h
        h = jnp.dot(h_in, w, preferred_element_type=jnp.float32)
        h = jnp.where(h > 0, h, NEG_SLOPE * h)           # leaky_relu, f32 on the VPU
    w_last = w_refs[num_layers - 1][...]
    h_in = h.astype(w_last.dtype) if h.dtype != w_last.dtype else h
    out_ref[...] = jnp.dot(
        h_in, w_last, preferred_element_type=jnp.float32
    ).astype(out_ref.dtype)                              # lane-dense (128-wide) store


def prepare_weights(weights, *, use_bf16=False):
    """One-time preprocessing — keep OUT of the per-call forward path.

    Transposes nn.Linear weights (out,in) -> (in,out) and zero-pads both feature
    dims to multiples of 128 so every matmul and the output store are lane-dense.
    Zero padding is mathematically exact for this network.
    If use_bf16, hidden-layer weights are stored as bf16 (the streamed activations
    follow this dtype); the final logits layer stays f32.
    """
    prepared = []
    for idx, w in enumerate(weights):
        out_d, in_d = w.shape
        wt = jnp.transpose(w).astype(jnp.float32)        # (in, out)
        wt = jnp.pad(wt, ((0, _round_up(in_d, LANE) - in_d),
                          (0, _round_up(out_d, LANE) - out_d)))
        if use_bf16 and idx < len(weights) - 1:
            wt = wt.astype(jnp.bfloat16)
        prepared.append(wt)
    return prepared


def _vmem_capacity_bytes():
    """Per-TensorCore VMEM capacity (v5e/v6e: 128 MiB, v7x: 64 MiB)."""
    try:
        return int(pltpu.get_tpu_info().vmem_capacity_bytes)
    except Exception:
        return 64 << 20   # conservative default (v7x per-core VMEM)


def _pick_block_m(n, in_pad, out_pad, act_itemsize, resident_weight_bytes, budget):
    """Largest batch tile (multiple of 128, up to 1024) that fits the VMEM budget."""
    def usage(bm):
        return (resident_weight_bytes
                + 2 * bm * in_pad * act_itemsize   # double-buffered x tiles
                + 2 * bm * out_pad * 4)            # double-buffered f32 out tiles
    n_aligned = _round_up(max(n, 1), SUBLANE)
    for bm in (1024, 512, 256, 128):
        if bm <= n_aligned and usage(bm) <= budget:
            return bm, usage(bm)
    # Small batch (or very tight budget): smallest sublane-aligned tile <= 128.
    bm = min(n_aligned, 128)
    return bm, usage(bm)


def classical_nn_forward(x, prepared_wts, out_dim, *, block_m=None):
    """x: (N, C, H, W); prepared_wts from prepare_weights(); returns (N, out_dim)."""
    n = x.shape[0]
    num_layers = len(prepared_wts)
    in_pad = prepared_wts[0].shape[0]
    out_pad = prepared_wts[-1].shape[1]
    # Streamed activation dtype tracks the first layer's weight dtype, so on the
    # bf16 path the x tiles are DMA'd at half width.
    act_dtype = prepared_wts[0].dtype
    act_itemsize = jnp.dtype(act_dtype).itemsize

    # Generation-aware VMEM budget. Each TensorCore holds its own copy of the
    # weights under the "parallel" batch split, so the per-core capacity is the
    # right bound. Budget conservatively assumes 2 buffers per weight even though
    # we request Buffered(1) below.
    vmem_cap = _vmem_capacity_bytes()
    budget = int(vmem_cap * 0.85)
    weight_bytes = sum(int(w.size) * jnp.dtype(w.dtype).itemsize for w in prepared_wts)
    if block_m is None:
        block_m, usage = _pick_block_m(n, in_pad, out_pad, act_itemsize,
                                       2 * weight_bytes, budget)
    else:
        usage = (2 * weight_bytes + 2 * block_m * in_pad * act_itemsize
                 + 2 * block_m * out_pad * 4)
    # TODO(synk): for configs whose padded weight blocks alone blow the per-core
    # VMEM budget (e.g. a 4096x4096 f32 layer on v7x), add a K-tiled fallback
    # ("arbitrary" contraction grid axis + f32 VMEM accumulator) instead of
    # whole-array weight residency.

    n_pad = _round_up(n, block_m)

    # .view(N, -1) equivalent; cast once to the streamed dtype, and only pad when
    # the static shapes actually need it (padding is a full extra HBM pass).
    x2d = x.reshape(n, -1).astype(act_dtype)
    in_dim = x2d.shape[1]
    if n_pad != n or in_pad != in_dim:
        x2d = jnp.pad(x2d, ((0, n_pad - n), (0, in_pad - in_dim)))

    vmem_limit = int(min(vmem_cap, max(usage * 3 // 2, 32 << 20)))
    kernel = functools.partial(_mlp_kernel, num_layers=num_layers)

    def build(single_buffer_weights):
        if single_buffer_weights:
            # Constant-index weight blocks never change across the grid: a single
            # VMEM buffer suffices, halving resident-weight VMEM.
            w_specs = [pl.BlockSpec(w.shape, lambda i: (0, 0),
                                    pipeline_mode=pl.Buffered(1))
                       for w in prepared_wts]
        else:
            w_specs = [pl.BlockSpec(w.shape, lambda i: (0, 0)) for w in prepared_wts]
        return pl.pallas_call(
            kernel,
            out_shape=jax.ShapeDtypeStruct((n_pad, out_pad), jnp.float32),
            grid=(n_pad // block_m,),
            in_specs=[pl.BlockSpec((block_m, in_pad), lambda i: (i, 0))] + w_specs,
            out_specs=pl.BlockSpec((block_m, out_pad), lambda i: (i, 0)),
            compiler_params=pltpu.CompilerParams(
                dimension_semantics=("parallel",),      # megacore batch split
                vmem_limit_bytes=vmem_limit),
        )

    try:
        out_padded = build(True)(x2d, *prepared_wts)
    except Exception:
        # Fallback if this jax build rejects Buffered(1) on constant blocks.
        out_padded = build(False)(x2d, *prepared_wts)

    return out_padded[:n, :out_dim]


def init_weights(key, size):
    """W_i shape (size[i], size[i-1]) like nn.Linear(in, out, bias=False)."""
    weights = []
    for i in range(1, len(size)):
        key, sub = jax.random.split(key)
        fan_in = size[i - 1]
        bound = 1.0 / (fan_in ** 0.5)   # torch default uniform(-1/sqrt(in), 1/sqrt(in))
        weights.append(
            jax.random.uniform(sub, (size[i], size[i - 1]), jnp.float32, -bound, bound)
        )
    return weights


def reference_forward(x, weights):
    """Pure-JAX reference of the PyTorch forward for correctness checks."""
    h = x.reshape(x.shape[0], -1)
    for w in weights[:-1]:
        h = h @ w.T
        h = jnp.where(h > 0, h, NEG_SLOPE * h)
    return h @ weights[-1].T


if __name__ == "__main__":
    key = jax.random.PRNGKey(0)
    k_x, k_w = jax.random.split(key)

    # small MNIST-like config: input image (2, 4, 16, 16) -> 1024 features
    batch, c, hh, ww = 2, 4, 16, 16
    size = [c * hh * ww, 128, 64, 10]

    x = jax.random.normal(k_x, (batch, c, hh, ww), jnp.float32)
    weights = init_weights(k_w, size)
    ref = reference_forward(x, weights)

    # f32 path (exact up to f32 rounding): tight tolerance
    wts_f32 = prepare_weights(weights)
    out = jax.block_until_ready(classical_nn_forward(x, wts_f32, size[-1]))
    assert out.shape == (batch, size[-1])
    assert jnp.allclose(out, ref, atol=1e-4, rtol=1e-4)

    # bf16 fast path (bf16 weights + bf16-streamed x, f32 accumulation): looser tolerance
    wts_bf16 = prepare_weights(weights, use_bf16=True)
    out_bf16 = jax.block_until_ready(classical_nn_forward(x, wts_bf16, size[-1]))
    assert out_bf16.shape == (batch, size[-1])
    assert jnp.allclose(out_bf16, ref, atol=5e-2, rtol=5e-2)

    print("KERNEL_OK")
</pallas_src>

<mosaic_0001>
module attributes {stable_mosaic.version = 11 : i64} {
  func.func @_mlp_kernel(%arg0: i32, %arg1: memref<8x1024xf32, #tpu.memory_space<vmem>>, %arg2: memref<1024x128xf32, #tpu.memory_space<vmem>>, %arg3: memref<128x128xf32, #tpu.memory_space<vmem>>, %arg4: memref<128x128xf32, #tpu.memory_space<vmem>>, %arg5: memref<8x128xf32, #tpu.memory_space<vmem>>) attributes {dimension_semantics = [#tpu.dimension_semantics<parallel>], iteration_bounds = array<i64: 1>, scalar_prefetch = 0 : i64, scratch_operands = 0 : i64, tpu.core_type = #tpu.core_type<tc>, window_params = [{transform_indices = @transform_0, window_bounds = array<i64: 8, 1024>}, {pipeline_mode = #tpu.pipeline_mode<synchronous>, transform_indices = @transform_1, window_bounds = array<i64: 1024, 128>}, {pipeline_mode = #tpu.pipeline_mode<synchronous>, transform_indices = @transform_2, window_bounds = array<i64: 128, 128>}, {pipeline_mode = #tpu.pipeline_mode<synchronous>, transform_indices = @transform_3, window_bounds = array<i64: 128, 128>}, {transform_indices = @transform_4, window_bounds = array<i64: 8, 128>}]} {
    %c0 = arith.constant 0 : index
    %c0_0 = arith.constant 0 : index
    %0 = vector.load %arg1[%c0, %c0_0] : memref<8x1024xf32, #tpu.memory_space<vmem>>, vector<8x1024xf32>
    %c0_1 = arith.constant 0 : index
    %c0_2 = arith.constant 0 : index
    %1 = vector.load %arg2[%c0_1, %c0_2] : memref<1024x128xf32, #tpu.memory_space<vmem>>, vector<1024x128xf32>
    %cst = arith.constant dense<0.000000e+00> : vector<8x128xf32>
    %2 = tpu.matmul %0, %1, %cst {dimension_numbers = #tpu.dot_dimension_numbers<[1], [0], [0], [1], [0, 0, 1, 1], [], []>} : vector<8x1024xf32>, vector<1024x128xf32>, vector<8x128xf32> -> vector<8x128xf32>
    %cst_3 = arith.constant 0.000000e+00 : f32
    %3 = vector.broadcast %cst_3 : f32 to vector<8x128xf32>
    %4 = arith.cmpf ogt, %2, %3 : vector<8x128xf32>
    %cst_4 = arith.constant 0.00999999977 : f32
    %5 = vector.broadcast %cst_4 : f32 to vector<8x128xf32>
    %6 = arith.mulf %5, %2 : vector<8x128xf32>
    %7 = arith.select %4, %2, %6 : vector<8x128xi1>, vector<8x128xf32>
    %c0_5 = arith.constant 0 : index
    %c0_6 = arith.constant 0 : index
    %8 = vector.load %arg3[%c0_5, %c0_6] : memref<128x128xf32, #tpu.memory_space<vmem>>, vector<128x128xf32>
    %cst_7 = arith.constant dense<0.000000e+00> : vector<8x128xf32>
    %9 = tpu.matmul %7, %8, %cst_7 {dimension_numbers = #tpu.dot_dimension_numbers<[1], [0], [0], [1], [0, 0, 1, 1], [], []>} : vector<8x128xf32>, vector<128x128xf32>, vector<8x128xf32> -> vector<8x128xf32>
    %cst_8 = arith.constant 0.000000e+00 : f32
    %10 = vector.broadcast %cst_8 : f32 to vector<8x128xf32>
    %11 = arith.cmpf ogt, %9, %10 : vector<8x128xf32>
    %cst_9 = arith.constant 0.00999999977 : f32
    %12 = vector.broadcast %cst_9 : f32 to vector<8x128xf32>
    %13 = arith.mulf %12, %9 : vector<8x128xf32>
    %14 = arith.select %11, %9, %13 : vector<8x128xi1>, vector<8x128xf32>
    %c0_10 = arith.constant 0 : index
    %c0_11 = arith.constant 0 : index
    %15 = vector.load %arg4[%c0_10, %c0_11] : memref<128x128xf32, #tpu.memory_space<vmem>>, vector<128x128xf32>
    %cst_12 = arith.constant dense<0.000000e+00> : vector<8x128xf32>
    %16 = tpu.matmul %14, %15, %cst_12 {dimension_numbers = #tpu.dot_dimension_numbers<[1], [0], [0], [1], [0, 0, 1, 1], [], []>} : vector<8x128xf32>, vector<128x128xf32>, vector<8x128xf32> -> vector<8x128xf32>
    %c0_13 = arith.constant 0 : index
    %c0_14 = arith.constant 0 : index
    %17 = vector.load %arg5[%c0_13, %c0_14] : memref<8x128xf32, #tpu.memory_space<vmem>>, vector<8x128xf32>
    tpu.vector_store %arg5[%c0_13, %c0_14], %16 {strides = array<i32>} : memref<8x128xf32, #tpu.memory_space<vmem>>, vector<8x128xf32>,
    return
  }
  func.func @transform_0(%arg0: i32) -> (i32, i32) {
    %c0_i32 = arith.constant 0 : i32
    %c0_i32_0 = arith.constant 0 : i32
    return %arg0, %c0_i32 : i32, i32
  }
  func.func @transform_1(%arg0: i32) -> (i32, i32) {
    %c0_i32 = arith.constant 0 : i32
    %c0_i32_0 = arith.constant 0 : i32
    %c0_i32_1 = arith.constant 0 : i32
    return %c0_i32, %c0_i32_0 : i32, i32
  }
  func.func @transform_2(%arg0: i32) -> (i32, i32) {
    %c0_i32 = arith.constant 0 : i32
    %c0_i32_0 = arith.constant 0 : i32
    %c0_i32_1 = arith.constant 0 : i32
    return %c0_i32, %c0_i32_0 : i32, i32
  }
  func.func @transform_3(%arg0: i32) -> (i32, i32) {
    %c0_i32 = arith.constant 0 : i32
    %c0_i32_0 = arith.constant 0 : i32
    %c0_i32_1 = arith.constant 0 : i32
    return %c0_i32, %c0_i32_0 : i32, i32
  }
  func.func @transform_4(%arg0: i32) -> (i32, i32) {
    %c0_i32 = arith.constant 0 : i32
    %c0_i32_0 = arith.constant 0 : i32
    return %arg0, %c0_i32 : i32, i32
  }
}

module attributes {stable_mosaic.version = 11 : i64} {
  func.func @_mlp_kernel(%arg0: i32, %arg1: memref<8x1024xf32, #tpu.memory_space<vmem>>, %arg2: memref<1024x128xf32, #tpu.memory_space<vmem>>, %arg3: memref<128x128xf32, #tpu.memory_space<vmem>>, %arg4: memref<128x128xf32, #tpu.memory_space<vmem>>, %arg5: memref<8x128xf32, #tpu.memory_space<vmem>>) attributes {dimension_semantics = [#tpu.dimension_semantics<parallel>], iteration_bounds = array<i64: 1>, scalar_prefetch = 0 : i64, scratch_operands = 0 : i64, tpu.core_type = #tpu.core_type<tc>, window_params = [{transform_indices = @transform_0, window_bounds = array<i64: 8, 1024>}, {pipeline_mode = #tpu.pipeline_mode<synchronous>, transform_indices = @transform_1, window_bounds = array<i64: 1024, 128>}, {pipeline_mode = #tpu.pipeline_mode<synchronous>, transform_indices = @transform_2, window_bounds = array<i64: 128, 128>}, {pipeline_mode = #tpu.pipeline_mode<synchronous>, transform_indices = @transform_3, window_bounds = array<i64: 128, 128>}, {transform_indices = @transform_4, window_bounds = array<i64: 8, 128>}]} {
    %c0 = arith.constant 0 : index
    %c0_0 = arith.constant 0 : index
    %0 = vector.load %arg1[%c0, %c0_0] : memref<8x1024xf32, #tpu.memory_space<vmem>>, vector<8x1024xf32>
    %c0_1 = arith.constant 0 : index
    %c0_2 = arith.constant 0 : index
    %1 = vector.load %arg2[%c0_1, %c0_2] : memref<1024x128xf32, #tpu.memory_space<vmem>>, vector<1024x128xf32>
    %cst = arith.constant dense<0.000000e+00> : vector<8x128xf32>
    %2 = tpu.matmul %0, %1, %cst {dimension_numbers = #tpu.dot_dimension_numbers<[1], [0], [0], [1], [0, 0, 1, 1], [], []>} : vector<8x1024xf32>, vector<1024x128xf32>, vector<8x128xf32> -> vector<8x128xf32>
    %cst_3 = arith.constant 0.000000e+00 : f32
    %3 = vector.broadcast %cst_3 : f32 to vector<8x128xf32>
    %4 = arith.cmpf ogt, %2, %3 : vector<8x128xf32>
    %cst_4 = arith.constant 0.00999999977 : f32
    %5 = vector.broadcast %cst_4 : f32 to vector<8x128xf32>
    %6 = arith.mulf %5, %2 : vector<8x128xf32>
    %7 = arith.select %4, %2, %6 : vector<8x128xi1>, vector<8x128xf32>
    %c0_5 = arith.constant 0 : index
    %c0_6 = arith.constant 0 : index
    %8 = vector.load %arg3[%c0_5, %c0_6] : memref<128x128xf32, #tpu.memory_space<vmem>>, vector<128x128xf32>
    %cst_7 = arith.constant dense<0.000000e+00> : vector<8x128xf32>
    %9 = tpu.matmul %7, %8, %cst_7 {dimension_numbers = #tpu.dot_dimension_numbers<[1], [0], [0], [1], [0, 0, 1, 1], [], []>} : vector<8x128xf32>, vector<128x128xf32>, vector<8x128xf32> -> vector<8x128xf32>
    %cst_8 = arith.constant 0.000000e+00 : f32
    %10 = vector.broadcast %cst_8 : f32 to vector<8x128xf32>
    %11 = arith.cmpf ogt, %9, %10 : vector<8x128xf32>
    %cst_9 = arith.constant 0.00999999977 : f32
    %12 = vector.broadcast %cst_9 : f32 to vector<8x128xf32>
    %13 = arith.mulf %12, %9 : vector<8x128xf32>
    %14 = arith.select %11, %9, %13 : vector<8x128xi1>, vector<8x128xf32>
    %c0_10 = arith.constant 0 : index
    %c0_11 = arith.constant 0 : index
    %15 = vector.load %arg4[%c0_10, %c0_11] : memref<128x128xf32, #tpu.memory_space<vmem>>, vector<128x128xf32>
    %cst_12 = arith.constant dense<0.000000e+00> : vector<8x128xf32>
    %16 = tpu.matmul %14, %15, %cst_12 {dimension_numbers = #tpu.dot_dimension_numbers<[1], [0], [0], [1], [0, 0, 1, 1], [], []>} : vector<8x128xf32>, vector<128x128xf32>, vector<8x128xf32> -> vector<8x128xf32>
    %c0_13 = arith.constant 0 : index
    %c0_14 = arith.constant 0 : index
    %17 = vector.load %arg5[%c0_13, %c0_14] : memref<8x128xf32, #tpu.memory_space<vmem>>, vector<8x128xf32>
    tpu.vector_store %arg5[%c0_13, %c0_14], %16 {strides = array<i32>} : memref<8x128xf32, #tpu.memory_space<vmem>>, vector<8x128xf32>,
    return
  }
  func.func @transform_0(%arg0: i32) -> (i32, i32) {
    %c0_i32 = arith.constant 0 : i32
    %c0_i32_0 = arith.constant 0 : i32
    return %arg0, %c0_i32 : i32, i32
  }
  func.func @transform_1(%arg0: i32) -> (i32, i32) {
    %c0_i32 = arith.constant 0 : i32
    %c0_i32_0 = arith.constant 0 : i32
    %c0_i32_1 = arith.constant 0 : i32
    return %c0_i32, %c0_i32_0 : i32, i32
  }
  func.func @transform_2(%arg0: i32) -> (i32, i32) {
    %c0_i32 = arith.constant 0 : i32
    %c0_i32_0 = arith.constant 0 : i32
    %c0_i32_1 = arith.constant 0 : i32
    return %c0_i32, %c0_i32_0 : i32, i32
  }
  func.func @transform_3(%arg0: i32) -> (i32, i32) {
    %c0_i32 = arith.constant 0 : i32
    %c0_i32_0 = arith.constant 0 : i32
    %c0_i32_1 = arith.constant 0 : i32
    return %c0_i32, %c0_i32_0 : i32, i32
  }
  func.func @transform_4(%arg0: i32) -> (i32, i32) {
    %c0_i32 = arith.constant 0 : i32
    %c0_i32_0 = arith.constant 0 : i32
    return %arg0, %c0_i32 : i32, i32
  }
}

</mosaic_0001>

<llo_original>
// kernel: tpu_custom_call.1
$region0: #{tpu_custom_call.1}
  #allocation0 [shape = 'u32[]', space=smem, size = 0x4, offset = 0x4, fixed_abs, tag = 'smem constant byte address 0x4 - core index']
  #allocation1 [shape = 'u32[144,128]{1,0:T(1,128)}', space=vmem, size = 0x12000, scoped, tag = 'internal scratch']
  %s0 = inlined_call_operand.hbm [shape: f32[8,1024], index: 0, kind: input, shape index: {}]
  %s1 = inlined_call_operand.hbm [shape: f32[1024,128], index: 1, kind: input, shape index: {}]
  %s2 = inlined_call_operand.hbm [shape: f32[128,128], index: 2, kind: input, shape index: {}]
  %s3 = inlined_call_operand.hbm [shape: f32[128,128], index: 3, kind: input, shape index: {}]
  %s4 = inlined_call_operand.hbm [shape: f32[8,128], index: 4, kind: output, shape index: {}]
  %s5 = sld [smem:[#allocation0]]
  $region42: #{tpu_custom_call.1} parent=0
    _
  %s7 = ssub.s32 1, %s5
  %s8 = scalar_select 0, %s7, %s5
  $region1: #{tpu_custom_call.1} parent=0
    #allocation2 [shape = 'u8[32768]{0}', space=vmem, size = 0x8000, scoped, tag = 'input window, operand 0, single buffered']
    #allocation3 [shape = 's32[1]{0}', space=sflag, size = 0x4, scoped, tag = 'scoped memory for tpu_custom_call.1']
    #allocation4 [shape = 's32[1]{0}', space=sflag, size = 0x4, scoped, tag = 'scoped memory for tpu_custom_call.1']
    #allocation5 [shape = 'u8[524288]{0}', space=vmem, size = 0x80000, scoped, tag = 'input window, operand 1, single buffered']
    #allocation6 [shape = 's32[1]{0}', space=sflag, size = 0x4, scoped, tag = 'scoped memory for tpu_custom_call.1']
    #allocation7 [shape = 'u8[65536]{0}', space=vmem, size = 0x10000, scoped, tag = 'input window, operand 2, single buffered']
    #allocation8 [shape = 'u8[65536]{0}', space=vmem, size = 0x10000, scoped, tag = 'input window, operand 3, single buffered']
    #allocation9 [shape = 's32[1]{0}', space=sflag, size = 0x4, scoped, tag = 'scoped memory for tpu_custom_call.1']
    #allocation10 [shape = 'u8[4096]{0}', space=vmem, size = 0x1000, scoped, tag = 'output window, operand 0, single buffered']
    %9 = vsyncpa [#allocation3], 0
    %10 = vsyncpa [#allocation6], 0
    %11 = vsyncpa [#allocation9], 0
    %12 = vsyncpa [#allocation4], 0
    // Predicated region
    $region2: #{tpu_custom_call.1} parent=1 // pred_check
      _
    $region3: #{tpu_custom_call.1} parent=1 // pred_check_branch
      %14 = sbr.rel (0) target = $region5
    $region4: #{tpu_custom_call.1} parent=1 // pred_region
      %s16 = ssub.s32 1024, 1024
      %17 = vsyncadd [#allocation3], %s16
      %s19 = sshll.u32 [#allocation2], 4
      %s20 = int_to_ptr.vmem [resolvable:$true] %s19
      %22 = dma.hbm_to_vmem [thread:$0]  %s0, 1024, %s20, [#allocation3]
    $region5: #{tpu_custom_call.1} parent=1 // pred_fallthru
      _
    // Predicated region
    $region6: #{tpu_custom_call.1} parent=1 // pred_check
      _
    $region7: #{tpu_custom_call.1} parent=1 // pred_check_branch
      %24 = sbr.rel (0) target = $region9
    $region8: #{tpu_custom_call.1} parent=1 // pred_region
      %s26 = ssub.s32 16384, 16384
      %27 = vsyncadd [#allocation6], %s26
      %s28 = sshll.u32 [#allocation5], 4
      %s29 = int_to_ptr.vmem [resolvable:$true] %s28
      %34 = dma.hbm_to_vmem [thread:$0]  %s1, 16384, %s29, [#allocation6], 128, 128, 8
    $region9: #{tpu_custom_call.1} parent=1 // pred_fallthru
      _
    // Predicated region
    $region10: #{tpu_custom_call.1} parent=1 // pred_check
      _
    $region11: #{tpu_custom_call.1} parent=1 // pred_check_branch
      %36 = sbr.rel (0) target = $region13
    $region12: #{tpu_custom_call.1} parent=1 // pred_region
      %s38 = ssub.s32 2048, 2048
      %39 = vsyncadd [#allocation6], %s38
      %s40 = sshll.u32 [#allocation7], 4
      %s41 = int_to_ptr.vmem [resolvable:$true] %s40
      %46 = dma.hbm_to_vmem [thread:$0]  %s2, 2048, %s41, [#allocation6], 128, 128, 8
    $region13: #{tpu_custom_call.1} parent=1 // pred_fallthru
      _
    // Predicated region
    $region14: #{tpu_custom_call.1} parent=1 // pred_check
      _
    $region15: #{tpu_custom_call.1} parent=1 // pred_check_branch
      %48 = sbr.rel (0) target = $region17
    $region16: #{tpu_custom_call.1} parent=1 // pred_region
      %s50 = ssub.s32 2048, 2048
      %51 = vsyncadd [#allocation9], %s50
      %s52 = sshll.u32 [#allocation8], 4
      %s53 = int_to_ptr.vmem [resolvable:$true] %s52
      %58 = dma.hbm_to_vmem [thread:$0]  %s3, 2048, %s53, [#allocation9], 128, 128, 8
    $region17: #{tpu_custom_call.1} parent=1 // pred_fallthru
      _
    // Predicated region
    $region18: #{tpu_custom_call.1} parent=1 // pred_check
      _
    $region19: #{tpu_custom_call.1} parent=1 // pred_check_branch
      %60 = sbr.rel (0) target = $region21
    $region20: #{tpu_custom_call.1} parent=1 // pred_region
      %61 = dma.done [#allocation3], 1024
    $region21: #{tpu_custom_call.1} parent=1 // pred_fallthru
      _
    // Predicated region
    $region22: #{tpu_custom_call.1} parent=1 // pred_check
      _
    $region23: #{tpu_custom_call.1} parent=1 // pred_check_branch
      %63 = sbr.rel (0) target = $region25
    $region24: #{tpu_custom_call.1} parent=1 // pred_region
      %64 = dma.done [#allocation6], 16384
    $region25: #{tpu_custom_call.1} parent=1 // pred_fallthru
      _
    // Predicated region
    $region26: #{tpu_custom_call.1} parent=1 // pred_check
      _
    $region27: #{tpu_custom_call.1} parent=1 // pred_check_branch
      %66 = sbr.rel (0) target = $region29
    $region28: #{tpu_custom_call.1} parent=1 // pred_region
      %67 = dma.done [#allocation6], 2048
    $region29: #{tpu_custom_call.1} parent=1 // pred_fallthru
      _
    // Predicated region
    $region30: #{tpu_custom_call.1} parent=1 // pred_check
      _
    $region31: #{tpu_custom_call.1} parent=1 // pred_check_branch
      %69 = sbr.rel (0) target = $region33
    $region32: #{tpu_custom_call.1} parent=1 // pred_region
      %70 = dma.done [#allocation9], 2048
    $region33: #{tpu_custom_call.1} parent=1 // pred_fallthru
      _
    %v71 = vld [vmem:[#allocation2] sm:$0xff]
    %v72 = vld [vmem:[#allocation2 + $0x8] sm:$0xff]
    %v73 = vld [vmem:[#allocation2 + $0x10] sm:$0xff]
    %v74 = vld [vmem:[#allocation2 + $0x18] sm:$0xff]
    %v75 = vld [vmem:[#allocation2 + $0x20] sm:$0xff]
    %v76 = vld [vmem:[#allocation2 + $0x28] sm:$0xff]
    %v77 = vld [vmem:[#allocation2 + $0x30] sm:$0xff]
    %v78 = vld [vmem:[#allocation2 + $0x38] sm:$0xff]
    %v79 = vld [vmem:[#allocation5] sm:$0xff]
    %v80 = vld [vmem:[#allocation5 + $0x8] sm:$0xff]
    %v81 = vld [vmem:[#allocation5 + $0x10] sm:$0xff]
    %v82 = vld [vmem:[#allocation5 + $0x18] sm:$0xff]
    %v83 = vld [vmem:[#allocation5 + $0x20] sm:$0xff]
    %v84 = vld [vmem:[#allocation5 + $0x28] sm:$0xff]
    %v85 = vld [vmem:[#allocation5 + $0x30] sm:$0xff]
    %v86 = vld [vmem:[#allocation5 + $0x38] sm:$0xff]
    %v87 = vld [vmem:[#allocation5 + $0x40] sm:$0xff]
    %v88 = vld [vmem:[#allocation5 + $0x48] sm:$0xff]
    %v89 = vld [vmem:[#allocation5 + $0x50] sm:$0xff]
    %v90 = vld [vmem:[#allocation5 + $0x58] sm:$0xff]
    %v91 = vld [vmem:[#allocation5 + $0x60] sm:$0xff]
    %v92 = vld [vmem:[#allocation5 + $0x68] sm:$0xff]
    %v93 = vld [vmem:[#allocation5 + $0x70] sm:$0xff]
    %v94 = vld [vmem:[#allocation5 + $0x78] sm:$0xff]
    %v95 = vld [vmem:[#allocation5 + $0x80] sm:$0xff]
    %v96 = vld [vmem:[#allocation5 + $0x88] sm:$0xff]
    %v97 = vld [vmem:[#allocation5 + $0x90] sm:$0xff]
    %v98 = vld [vmem:[#allocation5 + $0x98] sm:$0xff]
    %v99 = vld [vmem:[#allocation5 + $0xa0] sm:$0xff]
    %v100 = vld [vmem:[#allocation5 + $0xa8] sm:$0xff]
    %v101 = vld [vmem:[#allocation5 + $0xb0] sm:$0xff]
    %v102 = vld [vmem:[#allocation5 + $0xb8] sm:$0xff]
    %v103 = vld [vmem:[#allocation5 + $0xc0] sm:$0xff]
    %v104 = vld [vmem:[#allocation5 + $0xc8] sm:$0xff]
    %v105 = vld [vmem:[#allocation5 + $0xd0] sm:$0xff]
    %v106 = vld [vmem:[#allocation5 + $0xd8] sm:$0xff]
    %v107 = vld [vmem:[#allocation5 + $0xe0] sm:$0xff]
    %v108 = vld [vmem:[#allocation5 + $0xe8] sm:$0xff]
    %v109 = vld [vmem:[#allocation5 + $0xf0] sm:$0xff]
    %v110 = vld [vmem:[#allocation5 + $0xf8] sm:$0xff]
    %v111 = vld [vmem:[#allocation5 + $0x100] sm:$0xff]
    %v112 = vld [vmem:[#allocation5 + $0x108] sm:$0xff]
    %v113 = vld [vmem:[#allocation5 + $0x110] sm:$0xff]
    %v114 = vld [vmem:[#allocation5 + $0x118] sm:$0xff]
    %v115 = vld [vmem:[#allocation5 + $0x120] sm:$0xff]
    %v116 = vld [vmem:[#allocation5 + $0x128] sm:$0xff]
    %v117 = vld [vmem:[#allocation5 + $0x130] sm:$0xff]
    %v118 = vld [vmem:[#allocation5 + $0x138] sm:$0xff]
    %v119 = vld [vmem:[#allocation5 + $0x140] sm:$0xff]
    %v120 = vld [vmem:[#allocation5 + $0x148] sm:$0xff]
    %v121 = vld [vmem:[#allocation5 + $0x150] sm:$0xff]
    %v122 = vld [vmem:[#allocation5 + $0x158] sm:$0xff]
    %v123 = vld [vmem:[#allocation5 + $0x160] sm:$0xff]
    %v124 = vld [vmem:[#allocation5 + $0x168] sm:$0xff]
    %v125 = vld [vmem:[#allocation5 + $0x170] sm:$0xff]
    %v126 = vld [vmem:[#allocation5 + $0x178] sm:$0xff]
    %v127 = vld [vmem:[#allocation5 + $0x180] sm:$0xff]
    %v128 = vld [vmem:[#allocation5 + $0x188] sm:$0xff]
    %v129 = vld [vmem:[#allocation5 + $0x190] sm:$0xff]
    %v130 = vld [vmem:[#allocation5 + $0x198] sm:$0xff]
    %v131 = vld [vmem:[#allocation5 + $0x1a0] sm:$0xff]
    %v132 = vld [vmem:[#allocation5 + $0x1a8] sm:$0xff]
    %v133 = vld [vmem:[#allocation5 + $0x1b0] sm:$0xff]
    %v134 = vld [vmem:[#allocation5 + $0x1b8] sm:$0xff]
    %v135 = vld [vmem:[#allocation5 + $0x1c0] sm:$0xff]
    %v136 = vld [vmem:[#allocation5 + $0x1c8] sm:$0xff]
    %v137 = vld [vmem:[#allocation5 + $0x1d0] sm:$0xff]
    %v138 = vld [vmem:[#allocation5 + $0x1d8] sm:$0xff]
    %v139 = vld [vmem:[#allocation5 + $0x1e0] sm:$0xff]
    %v140 = vld [vmem:[#allocation5 + $0x1e8] sm:$0xff]
    %v141 = vld [vmem:[#allocation5 + $0x1f0] sm:$0xff]
    %v142 = vld [vmem:[#allocation5 + $0x1f8] sm:$0xff]
    %v143 = vld [vmem:[#allocation5 + $0x200] sm:$0xff]
    %v144 = vld [vmem:[#allocation5 + $0x208] sm:$0xff]
    %v145 = vld [vmem:[#allocation5 + $0x210] sm:$0xff]
    %v146 = vld [vmem:[#allocation5 + $0x218] sm:$0xff]
    %v147 = vld [vmem:[#allocation5 + $0x220] sm:$0xff]
    %v148 = vld [vmem:[#allocation5 + $0x228] sm:$0xff]
    %v149 = vld [vmem:[#allocation5 + $0x230] sm:$0xff]
    %v150 = vld [vmem:[#allocation5 + $0x238] sm:$0xff]
    %v151 = vld [vmem:[#allocation5 + $0x240] sm:$0xff]
    %v152 = vld [vmem:[#allocation5 + $0x248] sm:$0xff]
    %v153 = vld [vmem:[#allocation5 + $0x250] sm:$0xff]
    %v154 = vld [vmem:[#allocation5 + $0x258] sm:$0xff]
    %v155 = vld [vmem:[#allocation5 + $0x260] sm:$0xff]
    %v156 = vld [vmem:[#allocation5 + $0x268] sm:$0xff]
    %v157 = vld [vmem:[#allocation5 + $0x270] sm:$0xff]
    %v158 = vld [vmem:[#allocation5 + $0x278] sm:$0xff]
    %v159 = vld [vmem:[#allocation5 + $0x280] sm:$0xff]
    %v160 = vld [vmem:[#allocation5 + $0x288] sm:$0xff]
    %v161 = vld [vmem:[#allocation5 + $0x290] sm:$0xff]
    %v162 = vld [vmem:[#allocation5 + $0x298] sm:$0xff]
    %v163 = vld [vmem:[#allocation5 + $0x2a0] sm:$0xff]
    %v164 = vld [vmem:[#allocation5 + $0x2a8] sm:$0xff]
    %v165 = vld [vmem:[#allocation5 + $0x2b0] sm:$0xff]
    %v166 = vld [vmem:[#allocation5 + $0x2b8] sm:$0xff]
    %v167 = vld [vmem:[#allocation5 + $0x2c0] sm:$0xff]
    %v168 = vld [vmem:[#allocation5 + $0x2c8] sm:$0xff]
    %v169 = vld [vmem:[#allocation5 + $0x2d0] sm:$0xff]
    %v170 = vld [vmem:[#allocation5 + $0x2d8] sm:$0xff]
    %v171 = vld [vmem:[#allocation5 + $0x2e0] sm:$0xff]
    %v172 = vld [vmem:[#allocation5 + $0x2e8] sm:$0xff]
    %v173 = vld [vmem:[#allocation5 + $0x2f0] sm:$0xff]
    %v174 = vld [vmem:[#allocation5 + $0x2f8] sm:$0xff]
    %v175 = vld [vmem:[#allocation5 + $0x300] sm:$0xff]
    %v176 = vld [vmem:[#allocation5 + $0x308] sm:$0xff]
    %v177 = vld [vmem:[#allocation5 + $0x310] sm:$0xff]
    %v178 = vld [vmem:[#allocation5 + $0x318] sm:$0xff]
    %v179 = vld [vmem:[#allocation5 + $0x320] sm:$0xff]
    %v180 = vld [vmem:[#allocation5 + $0x328] sm:$0xff]
    %v181 = vld [vmem:[#allocation5 + $0x330] sm:$0xff]
    %v182 = vld [vmem:[#allocation5 + $0x338] sm:$0xff]
    %v183 = vld [vmem:[#allocation5 + $0x340] sm:$0xff]
    %v184 = vld [vmem:[#allocation5 + $0x348] sm:$0xff]
    %v185 = vld [vmem:[#allocation5 + $0x350] sm:$0xff]
    %v186 = vld [vmem:[#allocation5 + $0x358] sm:$0xff]
    %v187 = vld [vmem:[#allocation5 + $0x360] sm:$0xff]
    %v188 = vld [vmem:[#allocation5 + $0x368] sm:$0xff]
    %v189 = vld [vmem:[#allocation5 + $0x370] sm:$0xff]
    %v190 = vld [vmem:[#allocation5 + $0x378] sm:$0xff]
    %v191 = vld [vmem:[#allocation5 + $0x380] sm:$0xff]
    %v192 = vld [vmem:[#allocation5 + $0x388] sm:$0xff]
    %v193 = vld [vmem:[#allocation5 + $0x390] sm:$0xff]
    %v194 = vld [vmem:[#allocation5 + $0x398] sm:$0xff]
    %v195 = vld [vmem:[#allocation5 + $0x3a0] sm:$0xff]
    %v196 = vld [vmem:[#allocation5 + $0x3a8] sm:$0xff]
    %v197 = vld [vmem:[#allocation5 + $0x3b0] sm:$0xff]
    %v198 = vld [vmem:[#allocation5 + $0x3b8] sm:$0xff]
    %v199 = vld [vmem:[#allocation5 + $0x3c0] sm:$0xff]
    %v200 = vld [vmem:[#allocation5 + $0x3c8] sm:$0xff]
    %v201 = vld [vmem:[#allocation5 + $0x3d0] sm:$0xff]
    %v202 = vld [vmem:[#allocation5 + $0x3d8] sm:$0xff]
    %v203 = vld [vmem:[#allocation5 + $0x3e0] sm:$0xff]
    %v204 = vld [vmem:[#allocation5 + $0x3e8] sm:$0xff]
    %v205 = vld [vmem:[#allocation5 + $0x3f0] sm:$0xff]
    %v206 = vld [vmem:[#allocation5 + $0x3f8] sm:$0xff]
    %207 = vmatprep.subr.mxu0 0.0
    %208 = vmatpush1.msra.mxu0 %v79
    %209 = vmatprep.subr.mxu0 0.0
    %210 = vmatpush1.msra.mxu0 %v80
    %211 = vmatprep.subr.mxu0 0.0
    %212 = vmatpush1.msra.mxu0 %v81
    %213 = vmatprep.subr.mxu0 0.0
    %214 = vmatpush1.msra.mxu0 %v82
    %215 = vmatprep.subr.mxu0 0.0
    %216 = vmatpush1.msra.mxu0 %v83
    %217 = vmatprep.subr.mxu0 0.0
    %218 = vmatpush1.msra.mxu0 %v84
    %219 = vmatprep.subr.mxu0 0.0
    %220 = vmatpush1.msra.mxu0 %v85
    %221 = vmatprep.subr.mxu0 0.0
    %222 = vmatpush1.msra.mxu0 %v86
    %223 = vmatprep.subr.mxu0 0.0
    %224 = vmatpush1.msra.mxu0 %v87
    %225 = vmatprep.subr.mxu0 0.0
    %226 = vmatpush1.msra.mxu0 %v88
    %227 = vmatprep.subr.mxu0 0.0
    %228 = vmatpush1.msra.mxu0 %v89
    %229 = vmatprep.subr.mxu0 0.0
    %230 = vmatpush1.msra.mxu0 %v90
    %231 = vmatprep.subr.mxu0 0.0
    %232 = vmatpush1.msra.mxu0 %v91
    %233 = vmatprep.subr.mxu0 0.0
    %234 = vmatpush1.msra.mxu0 %v92
    %235 = vmatprep.subr.mxu0 0.0
    %236 = vmatpush1.msra.mxu0 %v93
    %237 = vmatprep.subr.mxu0 0.0
    %238 = vmatpush1.msra.mxu0 %v94
    %239 = vmatprep.subr.mxu0 0.0
    %240 = vmatpush1.msra.mxu0 %v95
    %241 = vmatprep.subr.mxu0 0.0
    %242 = vmatpush1.msra.mxu0 %v96
    %243 = vmatprep.subr.mxu0 0.0
    %244 = vmatpush1.msra.mxu0 %v97
    %245 = vmatprep.subr.mxu0 0.0
    %246 = vmatpush1.msra.mxu0 %v98
    %247 = vmatprep.subr.mxu0 0.0
    %248 = vmatpush1.msra.mxu0 %v99
    %249 = vmatprep.subr.mxu0 0.0
    %250 = vmatpush1.msra.mxu0 %v100
    %251 = vmatprep.subr.mxu0 0.0
    %252 = vmatpush1.msra.mxu0 %v101
    %253 = vmatprep.subr.mxu0 0.0
    %254 = vmatpush1.msra.mxu0 %v102
    %255 = vmatprep.subr.mxu0 0.0
    %256 = vmatpush1.msra.mxu0 %v103
    %257 = vmatprep.subr.mxu0 0.0
    %258 = vmatpush1.msra.mxu0 %v104
    %259 = vmatprep.subr.mxu0 0.0
    %260 = vmatpush1.msra.mxu0 %v105
    %261 = vmatprep.subr.mxu0 0.0
    %262 = vmatpush1.msra.mxu0 %v106
    %263 = vmatprep.subr.mxu0 0.0
    %264 = vmatpush1.msra.mxu0 %v107
    %265 = vmatprep.subr.mxu0 0.0
    %266 = vmatpush1.msra.mxu0 %v108
    %267 = vmatprep.subr.mxu0 0.0
    %268 = vmatpush1.msra.mxu0 %v109
    %269 = vmatprep.subr.mxu0 0.0
    %270 = vmatpush1.msra.mxu0 %v110
    %271 = vmatprep.mubr.f32.mxu0 %v72
    %272 = vmatmul.mubr.f32.gmra.mrb[0].mxu0 %v71
    %v273 = vpop.f32.mrb[0].mxu0
    %v274 = vadd.f32 0.0, %v273
    %v275 = vpop.f32.mrb[0].mxu0
    %276 = vdwg.mxu0
    %277 = vmatprep.subr.mxu0 0.0
    %278 = vmatpush1.msra.mxu0 %v111
    %279 = vmatprep.subr.mxu0 0.0
    %280 = vmatpush1.msra.mxu0 %v112
    %281 = vmatprep.subr.mxu0 0.0
    %282 = vmatpush1.msra.mxu0 %v113
    %283 = vmatprep.subr.mxu0 0.0
    %284 = vmatpush1.msra.mxu0 %v114
    %285 = vmatprep.subr.mxu0 0.0
    %286 = vmatpush1.msra.mxu0 %v115
    %287 = vmatprep.subr.mxu0 0.0
    %288 = vmatpush1.msra.mxu0 %v116
    %289 = vmatprep.subr.mxu0 0.0
    %290 = vmatpush1.msra.mxu0 %v117
    %291 = vmatprep.subr.mxu0 0.0
    %292 = vmatpush1.msra.mxu0 %v118
    %293 = vmatprep.subr.mxu0 0.0
    %294 = vmatpush1.msra.mxu0 %v119
    %295 = vmatprep.subr.mxu0 0.0
    %296 = vmatpush1.msra.mxu0 %v120
    %297 = vmatprep.subr.mxu0 0.0
    %298 = vmatpush1.msra.mxu0 %v121
    %299 = vmatprep.subr.mxu0 0.0
    %300 = vmatpush1.msra.mxu0 %v122
    %301 = vmatprep.subr.mxu0 0.0
    %302 = vmatpush1.msra.mxu0 %v123
    %303 = vmatprep.subr.mxu0 0.0
    %304 = vmatpush1.msra.mxu0 %v124
    %305 = vmatprep.subr.mxu0 0.0
    %306 = vmatpush1.msra.mxu0 %v125
    %307 = vmatprep.subr.mxu0 0.0
    %308 = vmatpush1.msra.mxu0 %v126
    %309 = vmatprep.subr.mxu0 0.0
    %310 = vmatpush1.msra.mxu0 %v127
    %311 = vmatprep.subr.mxu0 0.0
    %312 = vmatpush1.msra.mxu0 %v128
    %313 = vmatprep.subr.mxu0 0.0
    %314 = vmatpush1.msra.mxu0 %v129
    %315 = vmatprep.subr.mxu0 0.0
    %316 = vmatpush1.msra.mxu0 %v130
    %317 = vmatprep.subr.mxu0 0.0
    %318 = vmatpush1.msra.mxu0 %v131
    %319 = vmatprep.subr.mxu0 0.0
    %320 = vmatpush1.msra.mxu0 %v132
    %321 = vmatprep.subr.mxu0 0.0
    %322 = vmatpush1.msra.mxu0 %v133
    %323 = vmatprep.subr.mxu0 0.0
    %324 = vmatpush1.msra.mxu0 %v134
    %325 = vmatprep.subr.mxu0 0.0
    %326 = vmatpush1.msra.mxu0 %v135
    %327 = vmatprep.subr.mxu0 0.0
    %328 = vmatpush1.msra.mxu0 %v136
    %329 = vmatprep.subr.mxu0 0.0
    %330 = vmatpush1.msra.mxu0 %v137
    %331 = vmatprep.subr.mxu0 0.0
    %332 = vmatpush1.msra.mxu0 %v138
    %333 = vmatprep.subr.mxu0 0.0
    %334 = vmatpush1.msra.mxu0 %v139
    %335 = vmatprep.subr.mxu0 0.0
    %336 = vmatpush1.msra.mxu0 %v140
    %337 = vmatprep.subr.mxu0 0.0
    %338 = vmatpush1.msra.mxu0 %v141
    %339 = vmatprep.subr.mxu0 0.0
    %340 = vmatpush1.msra.mxu0 %v142
    %341 = vmatprep.mubr.f32.mxu0 %v74
    %342 = vmatmul.mubr.f32.gmra.mrb[0].mxu0 %v73
    %v343 = vpop.f32.mrb[0].mxu0
    %v344 = vadd.f32 %v274, %v343
    %v345 = vpop.f32.mrb[0].mxu0
    %346 = vdwg.mxu0
    %347 = vmatprep.subr.mxu0 0.0
    %348 = vmatpush1.msra.mxu0 %v143
    %349 = vmatprep.subr.mxu0 0.0
    %350 = vmatpush1.msra.mxu0 %v144
    %351 = vmatprep.subr.mxu0 0.0
    %352 = vmatpush1.msra.mxu0 %v145
    %353 = vmatprep.subr.mxu0 0.0
    %354 = vmatpush1.msra.mxu0 %v146
    %355 = vmatprep.subr.mxu0 0.0
    %356 = vmatpush1.msra.mxu0 %v147
    %357 = vmatprep.subr.mxu0 0.0
    %358 = vmatpush1.msra.mxu0 %v148
    %359 = vmatprep.subr.mxu0 0.0
    %360 = vmatpush1.msra.mxu0 %v149
    %361 = vmatprep.subr.mxu0 0.0
    %362 = vmatpush1.msra.mxu0 %v150
    %363 = vmatprep.subr.mxu0 0.0
    %364 = vmatpush1.msra.mxu0 %v151
    %365 = vmatprep.subr.mxu0 0.0
    %366 = vmatpush1.msra.mxu0 %v152
    %367 = vmatprep.subr.mxu0 0.0
    %368 = vmatpush1.msra.mxu0 %v153
    %369 = vmatprep.subr.mxu0 0.0
    %370 = vmatpush1.msra.mxu0 %v154
    %371 = vmatprep.subr.mxu0 0.0
    %372 = vmatpush1.msra.mxu0 %v155
    %373 = vmatprep.subr.mxu0 0.0
    %374 = vmatpush1.msra.mxu0 %v156
    %375 = vmatprep.subr.mxu0 0.0
    %376 = vmatpush1.msra.mxu0 %v157
    %377 = vmatprep.subr.mxu0 0.0
    %378 = vmatpush1.msra.mxu0 %v158
    %379 = vmatprep.subr.mxu0 0.0
    %380 = vmatpush1.msra.mxu0 %v159
    %381 = vmatprep.subr.mxu0 0.0
    %382 = vmatpush1.msra.mxu0 %v160
    %383 = vmatprep.subr.mxu0 0.0
    %384 = vmatpush1.msra.mxu0 %v161
    %385 = vmatprep.subr.mxu0 0.0
    %386 = vmatpush1.msra.mxu0 %v162
    %387 = vmatprep.subr.mxu0 0.0
    %388 = vmatpush1.msra.mxu0 %v163
    %389 = vmatprep.subr.mxu0 0.0
    %390 = vmatpush1.msra.mxu0 %v164
    %391 = vmatprep.subr.mxu0 0.0
    %392 = vmatpush1.msra.mxu0 %v165
    %393 = vmatprep.subr.mxu0 0.0
    %394 = vmatpush1.msra.mxu0 %v166
    %395 = vmatprep.subr.mxu0 0.0
    %396 = vmatpush1.msra.mxu0 %v167
    %397 = vmatprep.subr.mxu0 0.0
    %398 = vmatpush1.msra.mxu0 %v168
    %399 = vmatprep.subr.mxu0 0.0
    %400 = vmatpush1.msra.mxu0 %v169
    %401 = vmatprep.subr.mxu0 0.0
    %402 = vmatpush1.msra.mxu0 %v170
    %403 = vmatprep.subr.mxu0 0.0
    %404 = vmatpush1.msra.mxu0 %v171
    %405 = vmatprep.subr.mxu0 0.0
    %406 = vmatpush1.msra.mxu0 %v172
    %407 = vmatprep.subr.mxu0 0.0
    %408 = vmatpush1.msra.mxu0 %v173
    %409 = vmatprep.subr.mxu0 0.0
    %410 = vmatpush1.msra.mxu0 %v174
    %411 = vmatprep.mubr.f32.mxu0 %v76
    %412 = vmatmul.mubr.f32.gmra.mrb[0].mxu0 %v75
    %v413 = vpop.f32.mrb[0].mxu0
    %v414 = vadd.f32 %v344, %v413
    %v415 = vpop.f32.mrb[0].mxu0
    %416 = vdwg.mxu0
    %417 = vmatprep.subr.mxu0 0.0
    %418 = vmatpush1.msra.mxu0 %v175
    %419 = vmatprep.subr.mxu0 0.0
    %420 = vmatpush1.msra.mxu0 %v176
    %421 = vmatprep.subr.mxu0 0.0
    %422 = vmatpush1.msra.mxu0 %v177
    %423 = vmatprep.subr.mxu0 0.0
    %424 = vmatpush1.msra.mxu0 %v178
    %425 = vmatprep.subr.mxu0 0.0
    %426 = vmatpush1.msra.mxu0 %v179
    %427 = vmatprep.subr.mxu0 0.0
    %428 = vmatpush1.msra.mxu0 %v180
    %429 = vmatprep.subr.mxu0 0.0
    %430 = vmatpush1.msra.mxu0 %v181
    %431 = vmatprep.subr.mxu0 0.0
    %432 = vmatpush1.msra.mxu0 %v182
    %433 = vmatprep.subr.mxu0 0.0
    %434 = vmatpush1.msra.mxu0 %v183
    %435 = vmatprep.subr.mxu0 0.0
    %436 = vmatpush1.msra.mxu0 %v184
    %437 = vmatprep.subr.mxu0 0.0
    %438 = vmatpush1.msra.mxu0 %v185
    %439 = vmatprep.subr.mxu0 0.0
    %440 = vmatpush1.msra.mxu0 %v186
    %441 = vmatprep.subr.mxu0 0.0
    %442 = vmatpush1.msra.mxu0 %v187
    %443 = vmatprep.subr.mxu0 0.0
    %444 = vmatpush1.msra.mxu0 %v188
    %445 = vmatprep.subr.mxu0 0.0
    %446 = vmatpush1.msra.mxu0 %v189
    %447 = vmatprep.subr.mxu0 0.0
    %448 = vmatpush1.msra.mxu0 %v190
    %449 = vmatprep.subr.mxu0 0.0
    %450 = vmatpush1.msra.mxu0 %v191
    %451 = vmatprep.subr.mxu0 0.0
    %452 = vmatpush1.msra.mxu0 %v192
    %453 = vmatprep.subr.mxu0 0.0
    %454 = vmatpush1.msra.mxu0 %v193
    %455 = vmatprep.subr.mxu0 0.0
    %456 = vmatpush1.msra.mxu0 %v194
    %457 = vmatprep.subr.mxu0 0.0
    %458 = vmatpush1.msra.mxu0 %v195
    %459 = vmatprep.subr.mxu0 0.0
    %460 = vmatpush1.msra.mxu0 %v196
    %461 = vmatprep.subr.mxu0 0.0
    %462 = vmatpush1.msra.mxu0 %v197
    %463 = vmatprep.subr.mxu0 0.0
    %464 = vmatpush1.msra.mxu0 %v198
    %465 = vmatprep.subr.mxu0 0.0
    %466 = vmatpush1.msra.mxu0 %v199
    %467 = vmatprep.subr.mxu0 0.0
    %468 = vmatpush1.msra.mxu0 %v200
    %469 = vmatprep.subr.mxu0 0.0
    %470 = vmatpush1.msra.mxu0 %v201
    %471 = vmatprep.subr.mxu0 0.0
    %472 = vmatpush1.msra.mxu0 %v202
    %473 = vmatprep.subr.mxu0 0.0
    %474 = vmatpush1.msra.mxu0 %v203
    %475 = vmatprep.subr.mxu0 0.0
    %476 = vmatpush1.msra.mxu0 %v204
    %477 = vmatprep.subr.mxu0 0.0
    %478 = vmatpush1.msra.mxu0 %v205
    %479 = vmatprep.subr.mxu0 0.0
    %480 = vmatpush1.msra.mxu0 %v206
    %481 = vmatprep.mubr.f32.mxu0 %v78
    %482 = vmatmul.mubr.f32.gmra.mrb[0].mxu0 %v77
    %v483 = vpop.f32.mrb[0].mxu0
    %v484 = vadd.f32 %v414, %v483
    %v485 = vpop.f32.mrb[0].mxu0
    %486 = vdwg.mxu0
    %vm487 = vcmp.gt.f32.partialorder %v484, 0.0
    %v488 = vmul.f32 %v484, 0.01
    %v489 = vsel %vm487, %v484, %v488
    %v490 = vld [vmem:[#allocation7] sm:$0xff]
    %v491 = vld [vmem:[#allocation7 + $0x8] sm:$0xff]
    %v492 = vld [vmem:[#allocation7 + $0x10] sm:$0xff]
    %v493 = vld [vmem:[#allocation7 + $0x18] sm:$0xff]
    %v494 = vld [vmem:[#allocation7 + $0x20] sm:$0xff]
    %v495 = vld [vmem:[#allocation7 + $0x28] sm:$0xff]
    %v496 = vld [vmem:[#allocation7 + $0x30] sm:$0xff]
    %v497 = vld [vmem:[#allocation7 + $0x38] sm:$0xff]
    %v498 = vld [vmem:[#allocation7 + $0x40] sm:$0xff]
    %v499 = vld [vmem:[#allocation7 + $0x48] sm:$0xff]
    %v500 = vld [vmem:[#allocation7 + $0x50] sm:$0xff]
    %v501 = vld [vmem:[#allocation7 + $0x58] sm:$0xff]
    %v502 = vld [vmem:[#allocation7 + $0x60] sm:$0xff]
    %v503 = vld [vmem:[#allocation7 + $0x68] sm:$0xff]
    %v504 = vld [vmem:[#allocation7 + $0x70] sm:$0xff]
    %v505 = vld [vmem:[#allocation7 + $0x78] sm:$0xff]
    %506 = vmatprep.subr.mxu0 0.0
    %507 = vmatpush1.msra.mxu0 %v490
    %508 = vmatprep.subr.mxu0 0.0
    %509 = vmatpush1.msra.mxu0 %v491
    %510 = vmatprep.subr.mxu0 0.0
    %511 = vmatpush1.msra.mxu0 %v492
    %512 = vmatprep.subr.mxu0 0.0
    %513 = vmatpush1.msra.mxu0 %v493
    %514 = vmatprep.subr.mxu0 0.0
    %515 = vmatpush1.msra.mxu0 %v494
    %516 = vmatprep.subr.mxu0 0.0
    %517 = vmatpush1.msra.mxu0 %v495
    %518 = vmatprep.subr.mxu0 0.0
    %519 = vmatpush1.msra.mxu0 %v496
    %520 = vmatprep.subr.mxu0 0.0
    %521 = vmatpush1.msra.mxu0 %v497
    %522 = vmatprep.subr.mxu0 0.0
    %523 = vmatpush1.msra.mxu0 %v498
    %524 = vmatprep.subr.mxu0 0.0
    %525 = vmatpush1.msra.mxu0 %v499
    %526 = vmatprep.subr.mxu0 0.0
    %527 = vmatpush1.msra.mxu0 %v500
    %528 = vmatprep.subr.mxu0 0.0
    %529 = vmatpush1.msra.mxu0 %v501
    %530 = vmatprep.subr.mxu0 0.0
    %531 = vmatpush1.msra.mxu0 %v502
    %532 = vmatprep.subr.mxu0 0.0
    %533 = vmatpush1.msra.mxu0 %v503
    %534 = vmatprep.subr.mxu0 0.0
    %535 = vmatpush1.msra.mxu0 %v504
    %536 = vmatprep.subr.mxu0 0.0
    %537 = vmatpush1.msra.mxu0 %v505
    %538 = vmatprep.subr.mxu0 0.0
    %539 = vmatpush1.msra.mxu0 0.0
    %540 = vmatprep.subr.mxu0 0.0
    %541 = vmatpush1.msra.mxu0 0.0
    %542 = vmatprep.subr.mxu0 0.0
    %543 = vmatpush1.msra.mxu0 0.0
    %544 = vmatprep.subr.mxu0 0.0
    %545 = vmatpush1.msra.mxu0 0.0
    %546 = vmatprep.subr.mxu0 0.0
    %547 = vmatpush1.msra.mxu0 0.0
    %548 = vmatprep.subr.mxu0 0.0
    %549 = vmatpush1.msra.mxu0 0.0
    %550 = vmatprep.subr.mxu0 0.0
    %551 = vmatpush1.msra.mxu0 0.0
    %552 = vmatprep.subr.mxu0 0.0
    %553 = vmatpush1.msra.mxu0 0.0
    %554 = vmatprep.subr.mxu0 0.0
    %555 = vmatpush1.msra.mxu0 0.0
    %556 = vmatprep.subr.mxu0 0.0
    %557 = vmatpush1.msra.mxu0 0.0
    %558 = vmatprep.subr.mxu0 0.0
    %559 = vmatpush1.msra.mxu0 0.0
    %560 = vmatprep.subr.mxu0 0.0
    %561 = vmatpush1.msra.mxu0 0.0
    %562 = vmatprep.subr.mxu0 0.0
    %563 = vmatpush1.msra.mxu0 0.0
    %564 = vmatprep.subr.mxu0 0.0
    %565 = vmatpush1.msra.mxu0 0.0
    %566 = vmatprep.subr.mxu0 0.0
    %567 = vmatpush1.msra.mxu0 0.0
    %568 = vmatprep.subr.mxu0 0.0
    %569 = vmatpush1.msra.mxu0 0.0
    %570 = vmatprep.mubr.f32.mxu0 0.0
    %571 = vmatmul.mubr.f32.gmra.mrb[0].mxu0 %v489
    %v572 = vpop.f32.mrb[0].mxu0
    %v573 = vadd.f32 0.0, %v572
    %v574 = vpop.f32.mrb[0].mxu0
    %575 = vdwg.mxu0
    %vm576 = vcmp.gt.f32.partialorder %v573, 0.0
    %v577 = vmul.f32 %v573, 0.01
    %v578 = vsel %vm576, %v573, %v577
    %v579 = vld [vmem:[#allocation8] sm:$0xff]
    %v580 = vld [vmem:[#allocation8 + $0x8] sm:$0xff]
    %v581 = vld [vmem:[#allocation8 + $0x10] sm:$0xff]
    %v582 = vld [vmem:[#allocation8 + $0x18] sm:$0xff]
    %v583 = vld [vmem:[#allocation8 + $0x20] sm:$0xff]
    %v584 = vld [vmem:[#allocation8 + $0x28] sm:$0xff]
    %v585 = vld [vmem:[#allocation8 + $0x30] sm:$0xff]
    %v586 = vld [vmem:[#allocation8 + $0x38] sm:$0xff]
    %v587 = vld [vmem:[#allocation8 + $0x40] sm:$0xff]
    %v588 = vld [vmem:[#allocation8 + $0x48] sm:$0xff]
    %v589 = vld [vmem:[#allocation8 + $0x50] sm:$0xff]
    %v590 = vld [vmem:[#allocation8 + $0x58] sm:$0xff]
    %v591 = vld [vmem:[#allocation8 + $0x60] sm:$0xff]
    %v592 = vld [vmem:[#allocation8 + $0x68] sm:$0xff]
    %v593 = vld [vmem:[#allocation8 + $0x70] sm:$0xff]
    %v594 = vld [vmem:[#allocation8 + $0x78] sm:$0xff]
    %595 = vmatprep.subr.mxu0 0.0
    %596 = vmatpush1.msra.mxu0 %v579
    %597 = vmatprep.subr.mxu0 0.0
    %598 = vmatpush1.msra.mxu0 %v580
    %599 = vmatprep.subr.mxu0 0.0
    %600 = vmatpush1.msra.mxu0 %v581
    %601 = vmatprep.subr.mxu0 0.0
    %602 = vmatpush1.msra.mxu0 %v582
    %603 = vmatprep.subr.mxu0 0.0
    %604 = vmatpush1.msra.mxu0 %v583
    %605 = vmatprep.subr.mxu0 0.0
    %606 = vmatpush1.msra.mxu0 %v584
    %607 = vmatprep.subr.mxu0 0.0
    %608 = vmatpush1.msra.mxu0 %v585
    %609 = vmatprep.subr.mxu0 0.0
    %610 = vmatpush1.msra.mxu0 %v586
    %611 = vmatprep.subr.mxu0 0.0
    %612 = vmatpush1.msra.mxu0 %v587
    %613 = vmatprep.subr.mxu0 0.0
    %614 = vmatpush1.msra.mxu0 %v588
    %615 = vmatprep.subr.mxu0 0.0
    %616 = vmatpush1.msra.mxu0 %v589
    %617 = vmatprep.subr.mxu0 0.0
    %618 = vmatpush1.msra.mxu0 %v590
    %619 = vmatprep.subr.mxu0 0.0
    %620 = vmatpush1.msra.mxu0 %v591
    %621 = vmatprep.subr.mxu0 0.0
    %622 = vmatpush1.msra.mxu0 %v592
    %623 = vmatprep.subr.mxu0 0.0
    %624 = vmatpush1.msra.mxu0 %v593
    %625 = vmatprep.subr.mxu0 0.0
    %626 = vmatpush1.msra.mxu0 %v594
    %627 = vmatprep.subr.mxu0 0.0
    %628 = vmatpush1.msra.mxu0 0.0
    %629 = vmatprep.subr.mxu0 0.0
    %630 = vmatpush1.msra.mxu0 0.0
    %631 = vmatprep.subr.mxu0 0.0
    %632 = vmatpush1.msra.mxu0 0.0
    %633 = vmatprep.subr.mxu0 0.0
    %634 = vmatpush1.msra.mxu0 0.0
    %635 = vmatprep.subr.mxu0 0.0
    %636 = vmatpush1.msra.mxu0 0.0
    %637 = vmatprep.subr.mxu0 0.0
    %638 = vmatpush1.msra.mxu0 0.0
    %639 = vmatprep.subr.mxu0 0.0
    %640 = vmatpush1.msra.mxu0 0.0
    %641 = vmatprep.subr.mxu0 0.0
    %642 = vmatpush1.msra.mxu0 0.0
    %643 = vmatprep.subr.mxu0 0.0
    %644 = vmatpush1.msra.mxu0 0.0
    %645 = vmatprep.subr.mxu0 0.0
    %646 = vmatpush1.msra.mxu0 0.0
    %647 = vmatprep.subr.mxu0 0.0
    %648 = vmatpush1.msra.mxu0 0.0
    %649 = vmatprep.subr.mxu0 0.0
    %650 = vmatpush1.msra.mxu0 0.0
    %651 = vmatprep.subr.mxu0 0.0
    %652 = vmatpush1.msra.mxu0 0.0
    %653 = vmatprep.subr.mxu0 0.0
    %654 = vmatpush1.msra.mxu0 0.0
    %655 = vmatprep.subr.mxu0 0.0
    %656 = vmatpush1.msra.mxu0 0.0
    %657 = vmatprep.subr.mxu0 0.0
    %658 = vmatpush1.msra.mxu0 0.0
    %659 = vmatprep.mubr.f32.mxu0 0.0
    %660 = vmatmul.mubr.f32.gmra.mrb[0].mxu0 %v578
    %v661 = vpop.f32.mrb[0].mxu0
    %v662 = vadd.f32 0.0, %v661
    %v663 = vpop.f32.mrb[0].mxu0
    %664 = vdwg.mxu0
    %665 = vst [vmem:[#allocation10] sm:$0xff] %v662
    // Predicated region
    $region34: #{tpu_custom_call.1} parent=1 // pred_check
      _
    $region35: #{tpu_custom_call.1} parent=1 // pred_check_branch
      %667 = sbr.rel (0) target = $region37
    $region36: #{tpu_custom_call.1} parent=1 // pred_region
      %s669 = ssub.s32 128, 128
      %670 = vsyncadd [#allocation4], %s669
      %s672 = sshll.u32 [#allocation10], 4
      %s673 = int_to_ptr.vmem [resolvable:$true] %s672
      %675 = dma.vmem_to_hbm [thread:$0]  %s673, 128, %s4, [#allocation4]
    $region37: #{tpu_custom_call.1} parent=1 // pred_fallthru
      _
    // Predicated region
    $region38: #{tpu_custom_call.1} parent=1 // pred_check
      _
    $region39: #{tpu_custom_call.1} parent=1 // pred_check_branch
      %677 = sbr.rel (0) target = $region41
    $region40: #{tpu_custom_call.1} parent=1 // pred_region
      %678 = dma.done [#allocation4], 128
    $region41: #{tpu_custom_call.1} parent=1 // pred_fallthru
      _
    %679 = vsyncpa [#allocation3], 1
    %680 = vsyncpa [#allocation6], 1
    %681 = vsyncpa [#allocation9], 1
    %682 = vsyncpa [#allocation4], 1

// kernel: tpu_custom_call.1
$region0: #{tpu_custom_call.1}
  #allocation0 [shape = 'u32[]', space=smem, size = 0x4, offset = 0x4, fixed_abs, tag = 'smem constant byte address 0x4 - core index']
  #allocation1 [shape = 'u32[144,128]{1,0:T(1,128)}', space=vmem, size = 0x12000, scoped, tag = 'internal scratch']
  %s0 = inlined_call_operand.hbm [shape: f32[8,1024], index: 0, kind: input, shape index: {}]
  %s1 = inlined_call_operand.hbm [shape: f32[1024,128], index: 1, kind: input, shape index: {}]
  %s2 = inlined_call_operand.hbm [shape: f32[128,128], index: 2, kind: input, shape index: {}]
  %s3 = inlined_call_operand.hbm [shape: f32[128,128], index: 3, kind: input, shape index: {}]
  %s4 = inlined_call_operand.hbm [shape: f32[8,128], index: 4, kind: output, shape index: {}]
  %s5 = sld [smem:[#allocation0]]
  $region42: #{tpu_custom_call.1} parent=0
    _
  %s7 = ssub.s32 1, %s5
  %s8 = scalar_select 0, %s7, %s5
  $region1: #{tpu_custom_call.1} parent=0
    #allocation2 [shape = 'u8[32768]{0}', space=vmem, size = 0x8000, scoped, tag = 'input window, operand 0, single buffered']
    #allocation3 [shape = 's32[1]{0}', space=sflag, size = 0x4, scoped, tag = 'scoped memory for tpu_custom_call.1']
    #allocation4 [shape = 's32[1]{0}', space=sflag, size = 0x4, scoped, tag = 'scoped memory for tpu_custom_call.1']
    #allocation5 [shape = 'u8[524288]{0}', space=vmem, size = 0x80000, scoped, tag = 'input window, operand 1, single buffered']
    #allocation6 [shape = 's32[1]{0}', space=sflag, size = 0x4, scoped, tag = 'scoped memory for tpu_custom_call.1']
    #allocation7 [shape = 'u8[65536]{0}', space=vmem, size = 0x10000, scoped, tag = 'input window, operand 2, single buffered']
    #allocation8 [shape = 'u8[65536]{0}', space=vmem, size = 0x10000, scoped, tag = 'input window, operand 3, single buffered']
    #allocation9 [shape = 's32[1]{0}', space=sflag, size = 0x4, scoped, tag = 'scoped memory for tpu_custom_call.1']
    #allocation10 [shape = 'u8[4096]{0}', space=vmem, size = 0x1000, scoped, tag = 'output window, operand 0, single buffered']
    %9 = vsyncpa [#allocation3], 0
    %10 = vsyncpa [#allocation6], 0
    %11 = vsyncpa [#allocation9], 0
    %12 = vsyncpa [#allocation4], 0
    // Predicated region
    $region2: #{tpu_custom_call.1} parent=1 // pred_check
      _
    $region3: #{tpu_custom_call.1} parent=1 // pred_check_branch
      %14 = sbr.rel (0) target = $region5
    $region4: #{tpu_custom_call.1} parent=1 // pred_region
      %s16 = ssub.s32 1024, 1024
      %17 = vsyncadd [#allocation3], %s16
      %s19 = sshll.u32 [#allocation2], 4
      %s20 = int_to_ptr.vmem [resolvable:$true] %s19
      %22 = dma.hbm_to_vmem [thread:$0]  %s0, 1024, %s20, [#allocation3]
    $region5: #{tpu_custom_call.1} parent=1 // pred_fallthru
      _
    // Predicated region
    $region6: #{tpu_custom_call.1} parent=1 // pred_check
      _
    $region7: #{tpu_custom_call.1} parent=1 // pred_check_branch
      %24 = sbr.rel (0) target = $region9
    $region8: #{tpu_custom_call.1} parent=1 // pred_region
      %s26 = ssub.s32 16384, 16384
      %27 = vsyncadd [#allocation6], %s26
      %s28 = sshll.u32 [#allocation5], 4
      %s29 = int_to_ptr.vmem [resolvable:$true] %s28
      %34 = dma.hbm_to_vmem [thread:$0]  %s1, 16384, %s29, [#allocation6], 128, 128, 8
    $region9: #{tpu_custom_call.1} parent=1 // pred_fallthru
      _
    // Predicated region
    $region10: #{tpu_custom_call.1} parent=1 // pred_check
      _
    $region11: #{tpu_custom_call.1} parent=1 // pred_check_branch
      %36 = sbr.rel (0) target = $region13
    $region12: #{tpu_custom_call.1} parent=1 // pred_region
      %s38 = ssub.s32 2048, 2048
      %39 = vsyncadd [#allocation6], %s38
      %s40 = sshll.u32 [#allocation7], 4
      %s41 = int_to_ptr.vmem [resolvable:$true] %s40
      %46 = dma.hbm_to_vmem [thread:$0]  %s2, 2048, %s41, [#allocation6], 128, 128, 8
    $region13: #{tpu_custom_call.1} parent=1 // pred_fallthru
      _
    // Predicated region
    $region14: #{tpu_custom_call.1} parent=1 // pred_check
      _
    $region15: #{tpu_custom_call.1} parent=1 // pred_check_branch
      %48 = sbr.rel (0) target = $region17
    $region16: #{tpu_custom_call.1} parent=1 // pred_region
      %s50 = ssub.s32 2048, 2048
      %51 = vsyncadd [#allocation9], %s50
      %s52 = sshll.u32 [#allocation8], 4
      %s53 = int_to_ptr.vmem [resolvable:$true] %s52
      %58 = dma.hbm_to_vmem [thread:$0]  %s3, 2048, %s53, [#allocation9], 128, 128, 8
    $region17: #{tpu_custom_call.1} parent=1 // pred_fallthru
      _
    // Predicated region
    $region18: #{tpu_custom_call.1} parent=1 // pred_check
      _
    $region19: #{tpu_custom_call.1} parent=1 // pred_check_branch
      %60 = sbr.rel (0) target = $region21
    $region20: #{tpu_custom_call.1} parent=1 // pred_region
      %61 = dma.done [#allocation3], 1024
    $region21: #{tpu_custom_call.1} parent=1 // pred_fallthru
      _
    // Predicated region
    $region22: #{tpu_custom_call.1} parent=1 // pred_check
      _
    $region23: #{tpu_custom_call.1} parent=1 // pred_check_branch
      %63 = sbr.rel (0) target = $region25
    $region24: #{tpu_custom_call.1} parent=1 // pred_region
      %64 = dma.done [#allocation6], 16384
    $region25: #{tpu_custom_call.1} parent=1 // pred_fallthru
      _
    // Predicated region
    $region26: #{tpu_custom_call.1} parent=1 // pred_check
      _
    $region27: #{tpu_custom_call.1} parent=1 // pred_check_branch
      %66 = sbr.rel (0) target = $region29
    $region28: #{tpu_custom_call.1} parent=1 // pred_region
      %67 = dma.done [#allocation6], 2048
    $region29: #{tpu_custom_call.1} parent=1 // pred_fallthru
      _
    // Predicated region
    $region30: #{tpu_custom_call.1} parent=1 // pred_check
      _
    $region31: #{tpu_custom_call.1} parent=1 // pred_check_branch
      %69 = sbr.rel (0) target = $region33
    $region32: #{tpu_custom_call.1} parent=1 // pred_region
      %70 = dma.done [#allocation9], 2048
    $region33: #{tpu_custom_call.1} parent=1 // pred_fallthru
      _
    %v71 = vld [vmem:[#allocation2] sm:$0xff]
    %v72 = vld [vmem:[#allocation2 + $0x8] sm:$0xff]
    %v73 = vld [vmem:[#allocation2 + $0x10] sm:$0xff]
    %v74 = vld [vmem:[#allocation2 + $0x18] sm:$0xff]
    %v75 = vld [vmem:[#allocation2 + $0x20] sm:$0xff]
    %v76 = vld [vmem:[#allocation2 + $0x28] sm:$0xff]
    %v77 = vld [vmem:[#allocation2 + $0x30] sm:$0xff]
    %v78 = vld [vmem:[#allocation2 + $0x38] sm:$0xff]
    %v79 = vld [vmem:[#allocation5] sm:$0xff]
    %v80 = vld [vmem:[#allocation5 + $0x8] sm:$0xff]
    %v81 = vld [vmem:[#allocation5 + $0x10] sm:$0xff]
    %v82 = vld [vmem:[#allocation5 + $0x18] sm:$0xff]
    %v83 = vld [vmem:[#allocation5 + $0x20] sm:$0xff]
    %v84 = vld [vmem:[#allocation5 + $0x28] sm:$0xff]
    %v85 = vld [vmem:[#allocation5 + $0x30] sm:$0xff]
    %v86 = vld [vmem:[#allocation5 + $0x38] sm:$0xff]
    %v87 = vld [vmem:[#allocation5 + $0x40] sm:$0xff]
    %v88 = vld [vmem:[#allocation5 + $0x48] sm:$0xff]
    %v89 = vld [vmem:[#allocation5 + $0x50] sm:$0xff]
    %v90 = vld [vmem:[#allocation5 + $0x58] sm:$0xff]
    %v91 = vld [vmem:[#allocation5 + $0x60] sm:$0xff]
    %v92 = vld [vmem:[#allocation5 + $0x68] sm:$0xff]
    %v93 = vld [vmem:[#allocation5 + $0x70] sm:$0xff]
    %v94 = vld [vmem:[#allocation5 + $0x78] sm:$0xff]
    %v95 = vld [vmem:[#allocation5 + $0x80] sm:$0xff]
    %v96 = vld [vmem:[#allocation5 + $0x88] sm:$0xff]
    %v97 = vld [vmem:[#allocation5 + $0x90] sm:$0xff]
    %v98 = vld [vmem:[#allocation5 + $0x98] sm:$0xff]
    %v99 = vld [vmem:[#allocation5 + $0xa0] sm:$0xff]
    %v100 = vld [vmem:[#allocation5 + $0xa8] sm:$0xff]
    %v101 = vld [vmem:[#allocation5 + $0xb0] sm:$0xff]
    %v102 = vld [vmem:[#allocation5 + $0xb8] sm:$0xff]
    %v103 = vld [vmem:[#allocation5 + $0xc0] sm:$0xff]
    %v104 = vld [vmem:[#allocation5 + $0xc8] sm:$0xff]
    %v105 = vld [vmem:[#allocation5 + $0xd0] sm:$0xff]
    %v106 = vld [vmem:[#allocation5 + $0xd8] sm:$0xff]
    %v107 = vld [vmem:[#allocation5 + $0xe0] sm:$0xff]
    %v108 = vld [vmem:[#allocation5 + $0xe8] sm:$0xff]
    %v109 = vld [vmem:[#allocation5 + $0xf0] sm:$0xff]
    %v110 = vld [vmem:[#allocation5 + $0xf8] sm:$0xff]
    %v111 = vld [vmem:[#allocation5 + $0x100] sm:$0xff]
    %v112 = vld [vmem:[#allocation5 + $0x108] sm:$0xff]
    %v113 = vld [vmem:[#allocation5 + $0x110] sm:$0xff]
    %v114 = vld [vmem:[#allocation5 + $0x118] sm:$0xff]
    %v115 = vld [vmem:[#allocation5 + $0x120] sm:$0xff]
    %v116 = vld [vmem:[#allocation5 + $0x128] sm:$0xff]
    %v117 = vld [vmem:[#allocation5 + $0x130] sm:$0xff]
    %v118 = vld [vmem:[#allocation5 + $0x138] sm:$0xff]
    %v119 = vld [vmem:[#allocation5 + $0x140] sm:$0xff]
    %v120 = vld [vmem:[#allocation5 + $0x148] sm:$0xff]
    %v121 = vld [vmem:[#allocation5 + $0x150] sm:$0xff]
    %v122 = vld [vmem:[#allocation5 + $0x158] sm:$0xff]
    %v123 = vld [vmem:[#allocation5 + $0x160] sm:$0xff]
    %v124 = vld [vmem:[#allocation5 + $0x168] sm:$0xff]
    %v125 = vld [vmem:[#allocation5 + $0x170] sm:$0xff]
    %v126 = vld [vmem:[#allocation5 + $0x178] sm:$0xff]
    %v127 = vld [vmem:[#allocation5 + $0x180] sm:$0xff]
    %v128 = vld [vmem:[#allocation5 + $0x188] sm:$0xff]
    %v129 = vld [vmem:[#allocation5 + $0x190] sm:$0xff]
    %v130 = vld [vmem:[#allocation5 + $0x198] sm:$0xff]
    %v131 = vld [vmem:[#allocation5 + $0x1a0] sm:$0xff]
    %v132 = vld [vmem:[#allocation5 + $0x1a8] sm:$0xff]
    %v133 = vld [vmem:[#allocation5 + $0x1b0] sm:$0xff]
    %v134 = vld [vmem:[#allocation5 + $0x1b8] sm:$0xff]
    %v135 = vld [vmem:[#allocation5 + $0x1c0] sm:$0xff]
    %v136 = vld [vmem:[#allocation5 + $0x1c8] sm:$0xff]
    %v137 = vld [vmem:[#allocation5 + $0x1d0] sm:$0xff]
    %v138 = vld [vmem:[#allocation5 + $0x1d8] sm:$0xff]
    %v139 = vld [vmem:[#allocation5 + $0x1e0] sm:$0xff]
    %v140 = vld [vmem:[#allocation5 + $0x1e8] sm:$0xff]
    %v141 = vld [vmem:[#allocation5 + $0x1f0] sm:$0xff]
    %v142 = vld [vmem:[#allocation5 + $0x1f8] sm:$0xff]
    %v143 = vld [vmem:[#allocation5 + $0x200] sm:$0xff]
    %v144 = vld [vmem:[#allocation5 + $0x208] sm:$0xff]
    %v145 = vld [vmem:[#allocation5 + $0x210] sm:$0xff]
    %v146 = vld [vmem:[#allocation5 + $0x218] sm:$0xff]
    %v147 = vld [vmem:[#allocation5 + $0x220] sm:$0xff]
    %v148 = vld [vmem:[#allocation5 + $0x228] sm:$0xff]
    %v149 = vld [vmem:[#allocation5 + $0x230] sm:$0xff]
    %v150 = vld [vmem:[#allocation5 + $0x238] sm:$0xff]
    %v151 = vld [vmem:[#allocation5 + $0x240] sm:$0xff]
    %v152 = vld [vmem:[#allocation5 + $0x248] sm:$0xff]
    %v153 = vld [vmem:[#allocation5 + $0x250] sm:$0xff]
    %v154 = vld [vmem:[#allocation5 + $0x258] sm:$0xff]
    %v155 = vld [vmem:[#allocation5 + $0x260] sm:$0xff]
    %v156 = vld [vmem:[#allocation5 + $0x268] sm:$0xff]
    %v157 = vld [vmem:[#allocation5 + $0x270] sm:$0xff]
    %v158 = vld [vmem:[#allocation5 + $0x278] sm:$0xff]
    %v159 = vld [vmem:[#allocation5 + $0x280] sm:$0xff]
    %v160 = vld [vmem:[#allocation5 + $0x288] sm:$0xff]
    %v161 = vld [vmem:[#allocation5 + $0x290] sm:$0xff]
    %v162 = vld [vmem:[#allocation5 + $0x298] sm:$0xff]
    %v163 = vld [vmem:[#allocation5 + $0x2a0] sm:$0xff]
    %v164 = vld [vmem:[#allocation5 + $0x2a8] sm:$0xff]
    %v165 = vld [vmem:[#allocation5 + $0x2b0] sm:$0xff]
    %v166 = vld [vmem:[#allocation5 + $0x2b8] sm:$0xff]
    %v167 = vld [vmem:[#allocation5 + $0x2c0] sm:$0xff]
    %v168 = vld [vmem:[#allocation5 + $0x2c8] sm:$0xff]
    %v169 = vld [vmem:[#allocation5 + $0x2d0] sm:$0xff]
    %v170 = vld [vmem:[#allocation5 + $0x2d8] sm:$0xff]
    %v171 = vld [vmem:[#allocation5 + $0x2e0] sm:$0xff]
    %v172 = vld [vmem:[#allocation5 + $0x2e8] sm:$0xff]
    %v173 = vld [vmem:[#allocation5 + $0x2f0] sm:$0xff]
    %v174 = vld [vmem:[#allocation5 + $0x2f8] sm:$0xff]
    %v175 = vld [vmem:[#allocation5 + $0x300] sm:$0xff]
    %v176 = vld [vmem:[#allocation5 + $0x308] sm:$0xff]
    %v177 = vld [vmem:[#allocation5 + $0x310] sm:$0xff]
    %v178 = vld [vmem:[#allocation5 + $0x318] sm:$0xff]
    %v179 = vld [vmem:[#allocation5 + $0x320] sm:$0xff]
    %v180 = vld [vmem:[#allocation5 + $0x328] sm:$0xff]
    %v181 = vld [vmem:[#allocation5 + $0x330] sm:$0xff]
    %v182 = vld [vmem:[#allocation5 + $0x338] sm:$0xff]
    %v183 = vld [vmem:[#allocation5 + $0x340] sm:$0xff]
    %v184 = vld [vmem:[#allocation5 + $0x348] sm:$0xff]
    %v185 = vld [vmem:[#allocation5 + $0x350] sm:$0xff]
    %v186 = vld [vmem:[#allocation5 + $0x358] sm:$0xff]
    %v187 = vld [vmem:[#allocation5 + $0x360] sm:$0xff]
    %v188 = vld [vmem:[#allocation5 + $0x368] sm:$0xff]
    %v189 = vld [vmem:[#allocation5 + $0x370] sm:$0xff]
    %v190 = vld [vmem:[#allocation5 + $0x378] sm:$0xff]
    %v191 = vld [vmem:[#allocation5 + $0x380] sm:$0xff]
    %v192 = vld [vmem:[#allocation5 + $0x388] sm:$0xff]
    %v193 = vld [vmem:[#allocation5 + $0x390] sm:$0xff]
    %v194 = vld [vmem:[#allocation5 + $0x398] sm:$0xff]
    %v195 = vld [vmem:[#allocation5 + $0x3a0] sm:$0xff]
    %v196 = vld [vmem:[#allocation5 + $0x3a8] sm:$0xff]
    %v197 = vld [vmem:[#allocation5 + $0x3b0] sm:$0xff]
    %v198 = vld [vmem:[#allocation5 + $0x3b8] sm:$0xff]
    %v199 = vld [vmem:[#allocation5 + $0x3c0] sm:$0xff]
    %v200 = vld [vmem:[#allocation5 + $0x3c8] sm:$0xff]
    %v201 = vld [vmem:[#allocation5 + $0x3d0] sm:$0xff]
    %v202 = vld [vmem:[#allocation5 + $0x3d8] sm:$0xff]
    %v203 = vld [vmem:[#allocation5 + $0x3e0] sm:$0xff]
    %v204 = vld [vmem:[#allocation5 + $0x3e8] sm:$0xff]
    %v205 = vld [vmem:[#allocation5 + $0x3f0] sm:$0xff]
    %v206 = vld [vmem:[#allocation5 + $0x3f8] sm:$0xff]
    %207 = vmatprep.subr.mxu0 0.0
    %208 = vmatpush1.msra.mxu0 %v79
    %209 = vmatprep.subr.mxu0 0.0
    %210 = vmatpush1.msra.mxu0 %v80
    %211 = vmatprep.subr.mxu0 0.0
    %212 = vmatpush1.msra.mxu0 %v81
    %213 = vmatprep.subr.mxu0 0.0
    %214 = vmatpush1.msra.mxu0 %v82
    %215 = vmatprep.subr.mxu0 0.0
    %216 = vmatpush1.msra.mxu0 %v83
    %217 = vmatprep.subr.mxu0 0.0
    %218 = vmatpush1.msra.mxu0 %v84
    %219 = vmatprep.subr.mxu0 0.0
    %220 = vmatpush1.msra.mxu0 %v85
    %221 = vmatprep.subr.mxu0 0.0
    %222 = vmatpush1.msra.mxu0 %v86
    %223 = vmatprep.subr.mxu0 0.0
    %224 = vmatpush1.msra.mxu0 %v87
    %225 = vmatprep.subr.mxu0 0.0
    %226 = vmatpush1.msra.mxu0 %v88
    %227 = vmatprep.subr.mxu0 0.0
    %228 = vmatpush1.msra.mxu0 %v89
    %229 = vmatprep.subr.mxu0 0.0
    %230 = vmatpush1.msra.mxu0 %v90
    %231 = vmatprep.subr.mxu0 0.0
    %232 = vmatpush1.msra.mxu0 %v91
    %233 = vmatprep.subr.mxu0 0.0
    %234 = vmatpush1.msra.mxu0 %v92
    %235 = vmatprep.subr.mxu0 0.0
    %236 = vmatpush1.msra.mxu0 %v93
    %237 = vmatprep.subr.mxu0 0.0
    %238 = vmatpush1.msra.mxu0 %v94
    %239 = vmatprep.subr.mxu0 0.0
    %240 = vmatpush1.msra.mxu0 %v95
    %241 = vmatprep.subr.mxu0 0.0
    %242 = vmatpush1.msra.mxu0 %v96
    %243 = vmatprep.subr.mxu0 0.0
    %244 = vmatpush1.msra.mxu0 %v97
    %245 = vmatprep.subr.mxu0 0.0
    %246 = vmatpush1.msra.mxu0 %v98
    %247 = vmatprep.subr.mxu0 0.0
    %248 = vmatpush1.msra.mxu0 %v99
    %249 = vmatprep.subr.mxu0 0.0
    %250 = vmatpush1.msra.mxu0 %v100
    %251 = vmatprep.subr.mxu0 0.0
    %252 = vmatpush1.msra.mxu0 %v101
    %253 = vmatprep.subr.mxu0 0.0
    %254 = vmatpush1.msra.mxu0 %v102
    %255 = vmatprep.subr.mxu0 0.0
    %256 = vmatpush1.msra.mxu0 %v103
    %257 = vmatprep.subr.mxu0 0.0
    %258 = vmatpush1.msra.mxu0 %v104
    %259 = vmatprep.subr.mxu0 0.0
    %260 = vmatpush1.msra.mxu0 %v105
    %261 = vmatprep.subr.mxu0 0.0
    %262 = vmatpush1.msra.mxu0 %v106
    %263 = vmatprep.subr.mxu0 0.0
    %264 = vmatpush1.msra.mxu0 %v107
    %265 = vmatprep.subr.mxu0 0.0
    %266 = vmatpush1.msra.mxu0 %v108
    %267 = vmatprep.subr.mxu0 0.0
    %268 = vmatpush1.msra.mxu0 %v109
    %269 = vmatprep.subr.mxu0 0.0
    %270 = vmatpush1.msra.mxu0 %v110
    %271 = vmatprep.mubr.f32.mxu0 %v72
    %272 = vmatmul.mubr.f32.gmra.mrb[0].mxu0 %v71
    %v273 = vpop.f32.mrb[0].mxu0
    %v274 = vadd.f32 0.0, %v273
    %v275 = vpop.f32.mrb[0].mxu0
    %276 = vdwg.mxu0
    %277 = vmatprep.subr.mxu0 0.0
    %278 = vmatpush1.msra.mxu0 %v111
    %279 = vmatprep.subr.mxu0 0.0
    %280 = vmatpush1.msra.mxu0 %v112
    %281 = vmatprep.subr.mxu0 0.0
    %282 = vmatpush1.msra.mxu0 %v113
    %283 = vmatprep.subr.mxu0 0.0
    %284 = vmatpush1.msra.mxu0 %v114
    %285 = vmatprep.subr.mxu0 0.0
    %286 = vmatpush1.msra.mxu0 %v115
    %287 = vmatprep.subr.mxu0 0.0
    %288 = vmatpush1.msra.mxu0 %v116
    %289 = vmatprep.subr.mxu0 0.0
    %290 = vmatpush1.msra.mxu0 %v117
    %291 = vmatprep.subr.mxu0 0.0
    %292 = vmatpush1.msra.mxu0 %v118
    %293 = vmatprep.subr.mxu0 0.0
    %294 = vmatpush1.msra.mxu0 %v119
    %295 = vmatprep.subr.mxu0 0.0
    %296 = vmatpush1.msra.mxu0 %v120
    %297 = vmatprep.subr.mxu0 0.0
    %298 = vmatpush1.msra.mxu0 %v121
    %299 = vmatprep.subr.mxu0 0.0
    %300 = vmatpush1.msra.mxu0 %v122
    %301 = vmatprep.subr.mxu0 0.0
    %302 = vmatpush1.msra.mxu0 %v123
    %303 = vmatprep.subr.mxu0 0.0
    %304 = vmatpush1.msra.mxu0 %v124
    %305 = vmatprep.subr.mxu0 0.0
    %306 = vmatpush1.msra.mxu0 %v125
    %307 = vmatprep.subr.mxu0 0.0
    %308 = vmatpush1.msra.mxu0 %v126
    %309 = vmatprep.subr.mxu0 0.0
    %310 = vmatpush1.msra.mxu0 %v127
    %311 = vmatprep.subr.mxu0 0.0
    %312 = vmatpush1.msra.mxu0 %v128
    %313 = vmatprep.subr.mxu0 0.0
    %314 = vmatpush1.msra.mxu0 %v129
    %315 = vmatprep.subr.mxu0 0.0
    %316 = vmatpush1.msra.mxu0 %v130
    %317 = vmatprep.subr.mxu0 0.0
    %318 = vmatpush1.msra.mxu0 %v131
    %319 = vmatprep.subr.mxu0 0.0
    %320 = vmatpush1.msra.mxu0 %v132
    %321 = vmatprep.subr.mxu0 0.0
    %322 = vmatpush1.msra.mxu0 %v133
    %323 = vmatprep.subr.mxu0 0.0
    %324 = vmatpush1.msra.mxu0 %v134
    %325 = vmatprep.subr.mxu0 0.0
    %326 = vmatpush1.msra.mxu0 %v135
    %327 = vmatprep.subr.mxu0 0.0
    %328 = vmatpush1.msra.mxu0 %v136
    %329 = vmatprep.subr.mxu0 0.0
    %330 = vmatpush1.msra.mxu0 %v137
    %331 = vmatprep.subr.mxu0 0.0
    %332 = vmatpush1.msra.mxu0 %v138
    %333 = vmatprep.subr.mxu0 0.0
    %334 = vmatpush1.msra.mxu0 %v139
    %335 = vmatprep.subr.mxu0 0.0
    %336 = vmatpush1.msra.mxu0 %v140
    %337 = vmatprep.subr.mxu0 0.0
    %338 = vmatpush1.msra.mxu0 %v141
    %339 = vmatprep.subr.mxu0 0.0
    %340 = vmatpush1.msra.mxu0 %v142
    %341 = vmatprep.mubr.f32.mxu0 %v74
    %342 = vmatmul.mubr.f32.gmra.mrb[0].mxu0 %v73
    %v343 = vpop.f32.mrb[0].mxu0
    %v344 = vadd.f32 %v274, %v343
    %v345 = vpop.f32.mrb[0].mxu0
    %346 = vdwg.mxu0
    %347 = vmatprep.subr.mxu0 0.0
    %348 = vmatpush1.msra.mxu0 %v143
    %349 = vmatprep.subr.mxu0 0.0
    %350 = vmatpush1.msra.mxu0 %v144
    %351 = vmatprep.subr.mxu0 0.0
    %352 = vmatpush1.msra.mxu0 %v145
    %353 = vmatprep.subr.mxu0 0.0
    %354 = vmatpush1.msra.mxu0 %v146
    %355 = vmatprep.subr.mxu0 0.0
    %356 = vmatpush1.msra.mxu0 %v147
    %357 = vmatprep.subr.mxu0 0.0
    %358 = vmatpush1.msra.mxu0 %v148
    %359 = vmatprep.subr.mxu0 0.0
    %360 = vmatpush1.msra.mxu0 %v149
    %361 = vmatprep.subr.mxu0 0.0
    %362 = vmatpush1.msra.mxu0 %v150
    %363 = vmatprep.subr.mxu0 0.0
    %364 = vmatpush1.msra.mxu0 %v151
    %365 = vmatprep.subr.mxu0 0.0
    %366 = vmatpush1.msra.mxu0 %v152
    %367 = vmatprep.subr.mxu0 0.0
    %368 = vmatpush1.msra.mxu0 %v153
    %369 = vmatprep.subr.mxu0 0.0
    %370 = vmatpush1.msra.mxu0 %v154
    %371 = vmatprep.subr.mxu0 0.0
    %372 = vmatpush1.msra.mxu0 %v155
    %373 = vmatprep.subr.mxu0 0.0
    %374 = vmatpush1.msra.mxu0 %v156
    %375 = vmatprep.subr.mxu0 0.0
    %376 = vmatpush1.msra.mxu0 %v157
    %377 = vmatprep.subr.mxu0 0.0
    %378 = vmatpush1.msra.mxu0 %v158
    %379 = vmatprep.subr.mxu0 0.0
    %380 = vmatpush1.msra.mxu0 %v159
    %381 = vmatprep.subr.mxu0 0.0
    %382 = vmatpush1.msra.mxu0 %v160
    %383 = vmatprep.subr.mxu0 0.0
    %384 = vmatpush1.msra.mxu0 %v161
    %385 = vmatprep.subr.mxu0 0.0
    %386 = vmatpush1.msra.mxu0 %v162
    %387 = vmatprep.subr.mxu0 0.0
    %388 = vmatpush1.msra.mxu0 %v163
    %389 = vmatprep.subr.mxu0 0.0
    %390 = vmatpush1.msra.mxu0 %v164
    %391 = vmatprep.subr.mxu0 0.0
    %392 = vmatpush1.msra.mxu0 %v165
    %393 = vmatprep.subr.mxu0 0.0
    %394 = vmatpush1.msra.mxu0 %v166
    %395 = vmatprep.subr.mxu0 0.0
    %396 = vmatpush1.msra.mxu0 %v167
    %397 = vmatprep.subr.mxu0 0.0
    %398 = vmatpush1.msra.mxu0 %v168
    %399 = vmatprep.subr.mxu0 0.0
    %400 = vmatpush1.msra.mxu0 %v169
    %401 = vmatprep.subr.mxu0 0.0
    %402 = vmatpush1.msra.mxu0 %v170
    %403 = vmatprep.subr.mxu0 0.0
    %404 = vmatpush1.msra.mxu0 %v171
    %405 = vmatprep.subr.mxu0 0.0
    %406 = vmatpush1.msra.mxu0 %v172
    %407 = vmatprep.subr.mxu0 0.0
    %408 = vmatpush1.msra.mxu0 %v173
    %409 = vmatprep.subr.mxu0 0.0
    %410 = vmatpush1.msra.mxu0 %v174
    %411 = vmatprep.mubr.f32.mxu0 %v76
    %412 = vmatmul.mubr.f32.gmra.mrb[0].mxu0 %v75
    %v413 = vpop.f32.mrb[0].mxu0
    %v414 = vadd.f32 %v344, %v413
    %v415 = vpop.f32.mrb[0].mxu0
    %416 = vdwg.mxu0
    %417 = vmatprep.subr.mxu0 0.0
    %418 = vmatpush1.msra.mxu0 %v175
    %419 = vmatprep.subr.mxu0 0.0
    %420 = vmatpush1.msra.mxu0 %v176
    %421 = vmatprep.subr.mxu0 0.0
    %422 = vmatpush1.msra.mxu0 %v177
    %423 = vmatprep.subr.mxu0 0.0
    %424 = vmatpush1.msra.mxu0 %v178
    %425 = vmatprep.subr.mxu0 0.0
    %426 = vmatpush1.msra.mxu0 %v179
    %427 = vmatprep.subr.mxu0 0.0
    %428 = vmatpush1.msra.mxu0 %v180
    %429 = vmatprep.subr.mxu0 0.0
    %430 = vmatpush1.msra.mxu0 %v181
    %431 = vmatprep.subr.mxu0 0.0
    %432 = vmatpush1.msra.mxu0 %v182
    %433 = vmatprep.subr.mxu0 0.0
    %434 = vmatpush1.msra.mxu0 %v183
    %435 = vmatprep.subr.mxu0 0.0
    %436 = vmatpush1.msra.mxu0 %v184
    %437 = vmatprep.subr.mxu0 0.0
    %438 = vmatpush1.msra.mxu0 %v185
    %439 = vmatprep.subr.mxu0 0.0
    %440 = vmatpush1.msra.mxu0 %v186
    %441 = vmatprep.subr.mxu0 0.0
    %442 = vmatpush1.msra.mxu0 %v187
    %443 = vmatprep.subr.mxu0 0.0
    %444 = vmatpush1.msra.mxu0 %v188
    %445 = vmatprep.subr.mxu0 0.0
    %446 = vmatpush1.msra.mxu0 %v189
    %447 = vmatprep.subr.mxu0 0.0
    %448 = vmatpush1.msra.mxu0 %v190
    %449 = vmatprep.subr.mxu0 0.0
    %450 = vmatpush1.msra.mxu0 %v191
    %451 = vmatprep.subr.mxu0 0.0
    %452 = vmatpush1.msra.mxu0 %v192
    %453 = vmatprep.subr.mxu0 0.0
    %454 = vmatpush1.msra.mxu0 %v193
    %455 = vmatprep.subr.mxu0 0.0
    %456 = vmatpush1.msra.mxu0 %v194
    %457 = vmatprep.subr.mxu0 0.0
    %458 = vmatpush1.msra.mxu0 %v195
    %459 = vmatprep.subr.mxu0 0.0
    %460 = vmatpush1.msra.mxu0 %v196
    %461 = vmatprep.subr.mxu0 0.0
    %462 = vmatpush1.msra.mxu0 %v197
    %463 = vmatprep.subr.mxu0 0.0
    %464 = vmatpush1.msra.mxu0 %v198
    %465 = vmatprep.subr.mxu0 0.0
    %466 = vmatpush1.msra.mxu0 %v199
    %467 = vmatprep.subr.mxu0 0.0
    %468 = vmatpush1.msra.mxu0 %v200
    %469 = vmatprep.subr.mxu0 0.0
    %470 = vmatpush1.msra.mxu0 %v201
    %471 = vmatprep.subr.mxu0 0.0
    %472 = vmatpush1.msra.mxu0 %v202
    %473 = vmatprep.subr.mxu0 0.0
    %474 = vmatpush1.msra.mxu0 %v203
    %475 = vmatprep.subr.mxu0 0.0
    %476 = vmatpush1.msra.mxu0 %v204
    %477 = vmatprep.subr.mxu0 0.0
    %478 = vmatpush1.msra.mxu0 %v205
    %479 = vmatprep.subr.mxu0 0.0
    %480 = vmatpush1.msra.mxu0 %v206
    %481 = vmatprep.mubr.f32.mxu0 %v78
    %482 = vmatmul.mubr.f32.gmra.mrb[0].mxu0 %v77
    %v483 = vpop.f32.mrb[0].mxu0
    %v484 = vadd.f32 %v414, %v483
    %v485 = vpop.f32.mrb[0].mxu0
    %486 = vdwg.mxu0
    %vm487 = vcmp.gt.f32.partialorder %v484, 0.0
    %v488 = vmul.f32 %v484, 0.01
    %v489 = vsel %vm487, %v484, %v488
    %v490 = vld [vmem:[#allocation7] sm:$0xff]
    %v491 = vld [vmem:[#allocation7 + $0x8] sm:$0xff]
    %v492 = vld [vmem:[#allocation7 + $0x10] sm:$0xff]
    %v493 = vld [vmem:[#allocation7 + $0x18] sm:$0xff]
    %v494 = vld [vmem:[#allocation7 + $0x20] sm:$0xff]
    %v495 = vld [vmem:[#allocation7 + $0x28] sm:$0xff]
    %v496 = vld [vmem:[#allocation7 + $0x30] sm:$0xff]
    %v497 = vld [vmem:[#allocation7 + $0x38] sm:$0xff]
    %v498 = vld [vmem:[#allocation7 + $0x40] sm:$0xff]
    %v499 = vld [vmem:[#allocation7 + $0x48] sm:$0xff]
    %v500 = vld [vmem:[#allocation7 + $0x50] sm:$0xff]
    %v501 = vld [vmem:[#allocation7 + $0x58] sm:$0xff]
    %v502 = vld [vmem:[#allocation7 + $0x60] sm:$0xff]
    %v503 = vld [vmem:[#allocation7 + $0x68] sm:$0xff]
    %v504 = vld [vmem:[#allocation7 + $0x70] sm:$0xff]
    %v505 = vld [vmem:[#allocation7 + $0x78] sm:$0xff]
    %506 = vmatprep.subr.mxu0 0.0
    %507 = vmatpush1.msra.mxu0 %v490
    %508 = vmatprep.subr.mxu0 0.0
    %509 = vmatpush1.msra.mxu0 %v491
    %510 = vmatprep.subr.mxu0 0.0
    %511 = vmatpush1.msra.mxu0 %v492
    %512 = vmatprep.subr.mxu0 0.0
    %513 = vmatpush1.msra.mxu0 %v493
    %514 = vmatprep.subr.mxu0 0.0
    %515 = vmatpush1.msra.mxu0 %v494
    %516 = vmatprep.subr.mxu0 0.0
    %517 = vmatpush1.msra.mxu0 %v495
    %518 = vmatprep.subr.mxu0 0.0
    %519 = vmatpush1.msra.mxu0 %v496
    %520 = vmatprep.subr.mxu0 0.0
    %521 = vmatpush1.msra.mxu0 %v497
    %522 = vmatprep.subr.mxu0 0.0
    %523 = vmatpush1.msra.mxu0 %v498
    %524 = vmatprep.subr.mxu0 0.0
    %525 = vmatpush1.msra.mxu0 %v499
    %526 = vmatprep.subr.mxu0 0.0
    %527 = vmatpush1.msra.mxu0 %v500
    %528 = vmatprep.subr.mxu0 0.0
    %529 = vmatpush1.msra.mxu0 %v501
    %530 = vmatprep.subr.mxu0 0.0
    %531 = vmatpush1.msra.mxu0 %v502
    %532 = vmatprep.subr.mxu0 0.0
    %533 = vmatpush1.msra.mxu0 %v503
    %534 = vmatprep.subr.mxu0 0.0
    %535 = vmatpush1.msra.mxu0 %v504
    %536 = vmatprep.subr.mxu0 0.0
    %537 = vmatpush1.msra.mxu0 %v505
    %538 = vmatprep.subr.mxu0 0.0
    %539 = vmatpush1.msra.mxu0 0.0
    %540 = vmatprep.subr.mxu0 0.0
    %541 = vmatpush1.msra.mxu0 0.0
    %542 = vmatprep.subr.mxu0 0.0
    %543 = vmatpush1.msra.mxu0 0.0
    %544 = vmatprep.subr.mxu0 0.0
    %545 = vmatpush1.msra.mxu0 0.0
    %546 = vmatprep.subr.mxu0 0.0
    %547 = vmatpush1.msra.mxu0 0.0
    %548 = vmatprep.subr.mxu0 0.0
    %549 = vmatpush1.msra.mxu0 0.0
    %550 = vmatprep.subr.mxu0 0.0
    %551 = vmatpush1.msra.mxu0 0.0
    %552 = vmatprep.subr.mxu0 0.0
    %553 = vmatpush1.msra.mxu0 0.0
    %554 = vmatprep.subr.mxu0 0.0
    %555 = vmatpush1.msra.mxu0 0.0
    %556 = vmatprep.subr.mxu0 0.0
    %557 = vmatpush1.msra.mxu0 0.0
    %558 = vmatprep.subr.mxu0 0.0
    %559 = vmatpush1.msra.mxu0 0.0
    %560 = vmatprep.subr.mxu0 0.0
    %561 = vmatpush1.msra.mxu0 0.0
    %562 = vmatprep.subr.mxu0 0.0
    %563 = vmatpush1.msra.mxu0 0.0
    %564 = vmatprep.subr.mxu0 0.0
    %565 = vmatpush1.msra.mxu0 0.0
    %566 = vmatprep.subr.mxu0 0.0
    %567 = vmatpush1.msra.mxu0 0.0
    %568 = vmatprep.subr.mxu0 0.0
    %569 = vmatpush1.msra.mxu0 0.0
    %570 = vmatprep.mubr.f32.mxu0 0.0
    %571 = vmatmul.mubr.f32.gmra.mrb[0].mxu0 %v489
    %v572 = vpop.f32.mrb[0].mxu0
    %v573 = vadd.f32 0.0, %v572
    %v574 = vpop.f32.mrb[0].mxu0
    %575 = vdwg.mxu0
    %vm576 = vcmp.gt.f32.partialorder %v573, 0.0
    %v577 = vmul.f32 %v573, 0.01
    %v578 = vsel %vm576, %v573, %v577
    %v579 = vld [vmem:[#allocation8] sm:$0xff]
    %v580 = vld [vmem:[#allocation8 + $0x8] sm:$0xff]
    %v581 = vld [vmem:[#allocation8 + $0x10] sm:$0xff]
    %v582 = vld [vmem:[#allocation8 + $0x18] sm:$0xff]
    %v583 = vld [vmem:[#allocation8 + $0x20] sm:$0xff]
    %v584 = vld [vmem:[#allocation8 + $0x28] sm:$0xff]
    %v585 = vld [vmem:[#allocation8 + $0x30] sm:$0xff]
    %v586 = vld [vmem:[#allocation8 + $0x38] sm:$0xff]
    %v587 = vld [vmem:[#allocation8 + $0x40] sm:$0xff]
    %v588 = vld [vmem:[#allocation8 + $0x48] sm:$0xff]
    %v589 = vld [vmem:[#allocation8 + $0x50] sm:$0xff]
    %v590 = vld [vmem:[#allocation8 + $0x58] sm:$0xff]
    %v591 = vld [vmem:[#allocation8 + $0x60] sm:$0xff]
    %v592 = vld [vmem:[#allocation8 + $0x68] sm:$0xff]
    %v593 = vld [vmem:[#allocation8 + $0x70] sm:$0xff]
    %v594 = vld [vmem:[#allocation8 + $0x78] sm:$0xff]
    %595 = vmatprep.subr.mxu0 0.0
    %596 = vmatpush1.msra.mxu0 %v579
    %597 = vmatprep.subr.mxu0 0.0
    %598 = vmatpush1.msra.mxu0 %v580
    %599 = vmatprep.subr.mxu0 0.0
    %600 = vmatpush1.msra.mxu0 %v581
    %601 = vmatprep.subr.mxu0 0.0
    %602 = vmatpush1.msra.mxu0 %v582
    %603 = vmatprep.subr.mxu0 0.0
    %604 = vmatpush1.msra.mxu0 %v583
    %605 = vmatprep.subr.mxu0 0.0
    %606 = vmatpush1.msra.mxu0 %v584
    %607 = vmatprep.subr.mxu0 0.0
    %608 = vmatpush1.msra.mxu0 %v585
    %609 = vmatprep.subr.mxu0 0.0
    %610 = vmatpush1.msra.mxu0 %v586
    %611 = vmatprep.subr.mxu0 0.0
    %612 = vmatpush1.msra.mxu0 %v587
    %613 = vmatprep.subr.mxu0 0.0
    %614 = vmatpush1.msra.mxu0 %v588
    %615 = vmatprep.subr.mxu0 0.0
    %616 = vmatpush1.msra.mxu0 %v589
    %617 = vmatprep.subr.mxu0 0.0
    %618 = vmatpush1.msra.mxu0 %v590
    %619 = vmatprep.subr.mxu0 0.0
    %620 = vmatpush1.msra.mxu0 %v591
    %621 = vmatprep.subr.mxu0 0.0
    %622 = vmatpush1.msra.mxu0 %v592
    %623 = vmatprep.subr.mxu0 0.0
    %624 = vmatpush1.msra.mxu0 %v593
    %625 = vmatprep.subr.mxu0 0.0
    %626 = vmatpush1.msra.mxu0 %v594
    %627 = vmatprep.subr.mxu0 0.0
    %628 = vmatpush1.msra.mxu0 0.0
    %629 = vmatprep.subr.mxu0 0.0
    %630 = vmatpush1.msra.mxu0 0.0
    %631 = vmatprep.subr.mxu0 0.0
    %632 = vmatpush1.msra.mxu0 0.0
    %633 = vmatprep.subr.mxu0 0.0
    %634 = vmatpush1.msra.mxu0 0.0
    %635 = vmatprep.subr.mxu0 0.0
    %636 = vmatpush1.msra.mxu0 0.0
    %637 = vmatprep.subr.mxu0 0.0
    %638 = vmatpush1.msra.mxu0 0.0
    %639 = vmatprep.subr.mxu0 0.0
    %640 = vmatpush1.msra.mxu0 0.0
    %641 = vmatprep.subr.mxu0 0.0
    %642 = vmatpush1.msra.mxu0 0.0
    %643 = vmatprep.subr.mxu0 0.0
    %644 = vmatpush1.msra.mxu0 0.0
    %645 = vmatprep.subr.mxu0 0.0
    %646 = vmatpush1.msra.mxu0 0.0
    %647 = vmatprep.subr.mxu0 0.0
    %648 = vmatpush1.msra.mxu0 0.0
    %649 = vmatprep.subr.mxu0 0.0
    %650 = vmatpush1.msra.mxu0 0.0
    %651 = vmatprep.subr.mxu0 0.0
    %652 = vmatpush1.msra.mxu0 0.0
    %653 = vmatprep.subr.mxu0 0.0
    %654 = vmatpush1.msra.mxu0 0.0
    %655 = vmatprep.subr.mxu0 0.0
    %656 = vmatpush1.msra.mxu0 0.0
    %657 = vmatprep.subr.mxu0 0.0
    %658 = vmatpush1.msra.mxu0 0.0
    %659 = vmatprep.mubr.f32.mxu0 0.0
    %660 = vmatmul.mubr.f32.gmra.mrb[0].mxu0 %v578
    %v661 = vpop.f32.mrb[0].mxu0
    %v662 = vadd.f32 0.0, %v661
    %v663 = vpop.f32.mrb[0].mxu0
    %664 = vdwg.mxu0
    %665 = vst [vmem:[#allocation10] sm:$0xff] %v662
    // Predicated region
    $region34: #{tpu_custom_call.1} parent=1 // pred_check
      _
    $region35: #{tpu_custom_call.1} parent=1 // pred_check_branch
      %667 = sbr.rel (0) target = $region37
    $region36: #{tpu_custom_call.1} parent=1 // pred_region
      %s669 = ssub.s32 128, 128
      %670 = vsyncadd [#allocation4], %s669
      %s672 = sshll.u32 [#allocation10], 4
      %s673 = int_to_ptr.vmem [resolvable:$true] %s672
      %675 = dma.vmem_to_hbm [thread:$0]  %s673, 128, %s4, [#allocation4]
    $region37: #{tpu_custom_call.1} parent=1 // pred_fallthru
      _
    // Predicated region
    $region38: #{tpu_custom_call.1} parent=1 // pred_check
      _
    $region39: #{tpu_custom_call.1} parent=1 // pred_check_branch
      %677 = sbr.rel (0) target = $region41
    $region40: #{tpu_custom_call.1} parent=1 // pred_region
      %678 = dma.done [#allocation4], 128
    $region41: #{tpu_custom_call.1} parent=1 // pred_fallthru
      _
    %679 = vsyncpa [#allocation3], 1
    %680 = vsyncpa [#allocation6], 1
    %681 = vsyncpa [#allocation9], 1
    %682 = vsyncpa [#allocation4], 1

</llo_original>
